<compile_context>
chip_gen: v6e
topology: v6e:2x2x1
jax: 0.10.0
libtpu: 0.0.40
codegen_flags: <defaults>
</compile_context>

<pallas_src>
import functools

import jax
import jax.numpy as jnp
from jax.experimental import pallas as pl
from jax.experimental.pallas import tpu as pltpu

# ----------------------------- model config ---------------------------------
VOCAB_SIZE   = 50
EMB_DIM      = 32
KERNEL_NUM   = 16
KERNEL_SIZES = (3, 4, 5)
CLASS_NUM    = 5
BATCH        = 2
SEQ_LEN      = 16


# ------------------------------ Pallas kernel -------------------------------
def _convnet_kernel(kernel_sizes, batch, seq_len, emb_dim, kernel_num,
                    class_num, tok_ref, emb_ref, convw_ref, bias_ref, fcw_ref,
                    out_ref):
    """Fused: embedding (one-hot matmul) -> per-branch im2col conv + bias +
    ReLU + max-over-time -> FC (as sum of per-branch dots) + bias."""
    B, L, E, C = batch, seq_len, emb_dim, kernel_num
    V = emb_ref.shape[0]

    # ---- embedding lookup as a one-hot MXU matmul (padding_idx row is 0) ----
    tok = tok_ref[...]                                          # (B*L, 1) int32
    lane_ids = jax.lax.broadcasted_iota(jnp.int32, (B * L, V), 1)
    onehot = (tok == lane_ids).astype(jnp.float32)              # (B*L, V)
    x = jnp.dot(onehot, emb_ref[...],
                preferred_element_type=jnp.float32)             # (B*L, E)
    x = x.reshape(B, L, E)

    # ---- conv branches: one deep-K im2col matmul each, FC folded in --------
    acc = jnp.zeros((B, class_num), jnp.float32)
    w_off = 0
    for i, k in enumerate(kernel_sizes):
        L_out = L - k + 1
        # im2col LHS: (B, L_out, k*E) -> (B*L_out, k*E), tau-major / e-minor
        xs = jnp.concatenate([x[:, t:t + L_out, :] for t in range(k)], axis=-1)
        xs = xs.reshape(B * L_out, k * E)
        w = convw_ref[w_off:w_off + k * E, :]                   # (k*E, C)
        w_off += k * E
        b = bias_ref[:, i * C:(i + 1) * C]                      # (1, C)
        h = jnp.dot(xs, w, preferred_element_type=jnp.float32) + b
        h = jnp.maximum(h, 0.0)                                 # ReLU
        feat = jnp.max(h.reshape(B, L_out, C), axis=1)          # (B, C)
        # FC contribution of this branch (avoids lane-axis concat of feats).
        acc = acc + jnp.dot(feat, fcw_ref[i * C:(i + 1) * C, :],
                            preferred_element_type=jnp.float32)

    out_ref[...] = acc + bias_ref[:, 3 * C:3 * C + class_num]   # + fc bias


def convnet_forward(tokens, emb_table, conv_ws, conv_bs, fc_w, fc_b):
    """tokens: (B, L) int32.  Returns logits (B, class_num)."""
    B, L = tokens.shape
    C = KERNEL_NUM

    # ---- host-side repack into a few lane-dense VMEM buffers ----
    tok = tokens.reshape(B * L, 1).astype(jnp.int32)            # (B*L, 1)
    emb = emb_table.astype(jnp.float32)                         # (V, E)

    # PyTorch Conv1d weight (C_out, C_in, k) -> im2col layout (k*C_in, C_out),
    # all branches stacked along the contraction axis into one slab.
    w_blocks = []
    for w in conv_ws:
        k = w.shape[-1]
        w_blocks.append(jnp.transpose(w, (2, 1, 0)).reshape(k * EMB_DIM, C))
    convw = jnp.concatenate(w_blocks, axis=0).astype(jnp.float32)  # (12*E, C)

    # All biases packed into one (1, 3C + class_num) buffer: [b3 | b4 | b5 | fcb]
    biases = jnp.concatenate(
        [b.reshape(-1) for b in conv_bs] + [fc_b.reshape(-1)]
    ).reshape(1, -1).astype(jnp.float32)                        # (1, 3C+class)

    fcw = fc_w.T.astype(jnp.float32)                            # (3C, class)

    kernel = functools.partial(_convnet_kernel, KERNEL_SIZES, B, L, EMB_DIM,
                               KERNEL_NUM, CLASS_NUM)
    vmem = pl.BlockSpec(memory_space=pltpu.MemorySpace.VMEM)
    return pl.pallas_call(
        kernel,
        out_shape=jax.ShapeDtypeStruct((B, CLASS_NUM), jnp.float32),
        in_specs=[vmem] * 5,
        out_specs=vmem,
    )(tok, emb, convw, biases, fcw)


# --------------------------- pure-JAX reference ------------------------------
def convnet_reference(tokens, emb_table, conv_ws, conv_bs, fc_w, fc_b):
    x = jnp.take(emb_table, tokens, axis=0).astype(jnp.float32)      # (B, L, E)
    feats = []
    for w, b in zip(conv_ws, conv_bs):
        k = w.shape[-1]
        L_out = x.shape[1] - k + 1
        acc = jnp.zeros((x.shape[0], L_out, w.shape[0]), jnp.float32)
        for tau in range(k):
            acc = acc + jnp.einsum("ble,ce->blc",
                                   x[:, tau:tau + L_out, :], w[:, :, tau])
        acc = jax.nn.relu(acc + b[None, None, :])
        feats.append(jnp.max(acc, axis=1))
    f = jnp.concatenate(feats, axis=-1)
    return f @ fc_w.T + fc_b[None, :]


# ---------------------------------- main -------------------------------------
if __name__ == "__main__":
    key = jax.random.PRNGKey(0)
    k_tok, k_emb, k_fc, *k_convs = jax.random.split(key, 3 + 2 * len(KERNEL_SIZES))

    tokens = jax.random.randint(k_tok, (BATCH, SEQ_LEN), 0, VOCAB_SIZE,
                                dtype=jnp.int32)

    # Embedding table, padding_idx=0 -> zero row.
    emb_table = jax.random.normal(k_emb, (VOCAB_SIZE, EMB_DIM), jnp.float32) * 0.1
    emb_table = emb_table.at[0].set(0.0)

    # Conv1d params: weight (C_out, C_in, k), bias (C_out,)
    conv_ws, conv_bs = [], []
    for i, ksz in enumerate(KERNEL_SIZES):
        kw, kb = jax.random.split(k_convs[i])
        fan_in = EMB_DIM * ksz
        bound = 1.0 / jnp.sqrt(fan_in)
        conv_ws.append(jax.random.uniform(kw, (KERNEL_NUM, EMB_DIM, ksz),
                                          jnp.float32, -bound, bound))
        conv_bs.append(jax.random.uniform(kb, (KERNEL_NUM,),
                                          jnp.float32, -bound, bound))

    # fc1: weight normal()*0.01, bias zero (as in the module __init__).
    fc_w = jax.random.normal(k_fc, (CLASS_NUM, len(KERNEL_SIZES) * KERNEL_NUM),
                             jnp.float32) * 0.01
    fc_b = jnp.zeros((CLASS_NUM,), jnp.float32)

    out = convnet_forward(tokens, emb_table, conv_ws, conv_bs, fc_w, fc_b)
    out = jax.block_until_ready(out)

    ref = convnet_reference(tokens, emb_table, conv_ws, conv_bs, fc_w, fc_b)
    assert out.shape == (BATCH, CLASS_NUM)
    assert jnp.allclose(out, ref, atol=1e-5, rtol=1e-5), (out, ref)

    print("KERNEL_OK")
</pallas_src>

<mosaic_0001>
module attributes {stable_mosaic.version = 11 : i64} {
  func.func @_convnet_kernel(%arg0: memref<32x1xi32, #tpu.memory_space<vmem>>, %arg1: memref<50x32xf32, #tpu.memory_space<vmem>>, %arg2: memref<384x16xf32, #tpu.memory_space<vmem>>, %arg3: memref<1x53xf32, #tpu.memory_space<vmem>>, %arg4: memref<48x5xf32, #tpu.memory_space<vmem>>, %arg5: memref<2x5xf32, #tpu.memory_space<vmem>>) attributes {dimension_semantics = [], scalar_prefetch = 0 : i64, scratch_operands = 0 : i64, tpu.core_type = #tpu.core_type<tc>} {
    %c0 = arith.constant 0 : index
    %c0_0 = arith.constant 0 : index
    %0 = vector.load %arg0[%c0, %c0_0] : memref<32x1xi32, #tpu.memory_space<vmem>>, vector<32x1xi32>
    %1 = tpu.iota {dimensions = array<i32: 1>} : vector<32x50xi32>
    %2 = vector.broadcast %0 : vector<32x1xi32> to vector<32x50xi32>
    %3 = arith.cmpi eq, %2, %1 : vector<32x50xi32>
    %4 = arith.extui %3 : vector<32x50xi1> to vector<32x50xi32>
    %5 = arith.sitofp %4 : vector<32x50xi32> to vector<32x50xf32>
    %c0_1 = arith.constant 0 : index
    %c0_2 = arith.constant 0 : index
    %6 = vector.load %arg1[%c0_1, %c0_2] : memref<50x32xf32, #tpu.memory_space<vmem>>, vector<50x32xf32>
    %cst = arith.constant dense<0.000000e+00> : vector<32x32xf32>
    %7 = tpu.matmul %5, %6, %cst {dimension_numbers = #tpu.dot_dimension_numbers<[1], [0], [0], [1], [0, 0, 1, 1], [], []>} : vector<32x50xf32>, vector<50x32xf32>, vector<32x32xf32> -> vector<32x32xf32>
    %8 = vector.shape_cast %7 : vector<32x32xf32> to vector<2x16x32xf32>
    %cst_3 = arith.constant 0.000000e+00 : f32
    %9 = vector.broadcast %cst_3 : f32 to vector<2x5xf32>
    %10 = vector.extract_strided_slice %8 {offsets = [0, 0, 0], sizes = [2, 14, 32], strides = [1, 1, 1]} : vector<2x16x32xf32> to vector<2x14x32xf32>
    %11 = vector.extract_strided_slice %8 {offsets = [0, 1, 0], sizes = [2, 14, 32], strides = [1, 1, 1]} : vector<2x16x32xf32> to vector<2x14x32xf32>
    %12 = vector.extract_strided_slice %8 {offsets = [0, 2, 0], sizes = [2, 14, 32], strides = [1, 1, 1]} : vector<2x16x32xf32> to vector<2x14x32xf32>
    %13 = tpu.concatenate %10, %11, %12 in 2 : vector<2x14x32xf32>, vector<2x14x32xf32>, vector<2x14x32xf32> -> vector<2x14x96xf32>
    %14 = vector.shape_cast %13 : vector<2x14x96xf32> to vector<28x96xf32>
    %c0_4 = arith.constant 0 : index
    %c0_5 = arith.constant 0 : index
    %15 = vector.load %arg2[%c0_4, %c0_5] : memref<384x16xf32, #tpu.memory_space<vmem>>, vector<96x16xf32>
    %c0_6 = arith.constant 0 : index
    %c0_7 = arith.constant 0 : index
    %16 = vector.load %arg3[%c0_6, %c0_7] : memref<1x53xf32, #tpu.memory_space<vmem>>, vector<1x16xf32>
    %cst_8 = arith.constant dense<0.000000e+00> : vector<28x16xf32>
    %17 = tpu.matmul %14, %15, %cst_8 {dimension_numbers = #tpu.dot_dimension_numbers<[1], [0], [0], [1], [0, 0, 1, 1], [], []>} : vector<28x96xf32>, vector<96x16xf32>, vector<28x16xf32> -> vector<28x16xf32>
    %18 = vector.broadcast %16 : vector<1x16xf32> to vector<28x16xf32>
    %19 = arith.addf %17, %18 : vector<28x16xf32>
    %cst_9 = arith.constant 0.000000e+00 : f32
    %20 = vector.broadcast %cst_9 : f32 to vector<28x16xf32>
    %21 = arith.maximumf %19, %20 : vector<28x16xf32>
    %22 = vector.shape_cast %21 : vector<28x16xf32> to vector<2x14x16xf32>
    %cst_10 = arith.constant dense<0xFF800000> : vector<2x16xf32>
    %23 = vector.multi_reduction <maximumf>, %22, %cst_10 [1] : vector<2x14x16xf32> to vector<2x16xf32>
    %c0_11 = arith.constant 0 : index
    %c0_12 = arith.constant 0 : index
    %24 = vector.load %arg4[%c0_11, %c0_12] : memref<48x5xf32, #tpu.memory_space<vmem>>, vector<16x5xf32>
    %cst_13 = arith.constant dense<0.000000e+00> : vector<2x5xf32>
    %25 = tpu.matmul %23, %24, %cst_13 {dimension_numbers = #tpu.dot_dimension_numbers<[1], [0], [0], [1], [0, 0, 1, 1], [], []>} : vector<2x16xf32>, vector<16x5xf32>, vector<2x5xf32> -> vector<2x5xf32>
    %26 = arith.addf %9, %25 : vector<2x5xf32>
    %27 = vector.extract_strided_slice %8 {offsets = [0, 0, 0], sizes = [2, 13, 32], strides = [1, 1, 1]} : vector<2x16x32xf32> to vector<2x13x32xf32>
    %28 = vector.extract_strided_slice %8 {offsets = [0, 1, 0], sizes = [2, 13, 32], strides = [1, 1, 1]} : vector<2x16x32xf32> to vector<2x13x32xf32>
    %29 = vector.extract_strided_slice %8 {offsets = [0, 2, 0], sizes = [2, 13, 32], strides = [1, 1, 1]} : vector<2x16x32xf32> to vector<2x13x32xf32>
    %30 = vector.extract_strided_slice %8 {offsets = [0, 3, 0], sizes = [2, 13, 32], strides = [1, 1, 1]} : vector<2x16x32xf32> to vector<2x13x32xf32>
    %31 = tpu.concatenate %27, %28, %29, %30 in 2 : vector<2x13x32xf32>, vector<2x13x32xf32>, vector<2x13x32xf32>, vector<2x13x32xf32> -> vector<2x13x128xf32>
    %32 = vector.shape_cast %31 : vector<2x13x128xf32> to vector<26x128xf32>
    %c96 = arith.constant 96 : index
    %c0_14 = arith.constant 0 : index
    %33 = vector.load %arg2[%c96, %c0_14] : memref<384x16xf32, #tpu.memory_space<vmem>>, vector<128x16xf32>
    %c0_15 = arith.constant 0 : index
    %c16 = arith.constant 16 : index
    %34 = vector.load %arg3[%c0_15, %c16] : memref<1x53xf32, #tpu.memory_space<vmem>>, vector<1x16xf32>
    %cst_16 = arith.constant dense<0.000000e+00> : vector<26x16xf32>
    %35 = tpu.matmul %32, %33, %cst_16 {dimension_numbers = #tpu.dot_dimension_numbers<[1], [0], [0], [1], [0, 0, 1, 1], [], []>} : vector<26x128xf32>, vector<128x16xf32>, vector<26x16xf32> -> vector<26x16xf32>
    %36 = vector.broadcast %34 : vector<1x16xf32> to vector<26x16xf32>
    %37 = arith.addf %35, %36 : vector<26x16xf32>
    %cst_17 = arith.constant 0.000000e+00 : f32
    %38 = vector.broadcast %cst_17 : f32 to vector<26x16xf32>
    %39 = arith.maximumf %37, %38 : vector<26x16xf32>
    %40 = vector.shape_cast %39 : vector<26x16xf32> to vector<2x13x16xf32>
    %cst_18 = arith.constant dense<0xFF800000> : vector<2x16xf32>
    %41 = vector.multi_reduction <maximumf>, %40, %cst_18 [1] : vector<2x13x16xf32> to vector<2x16xf32>
    %c16_19 = arith.constant 16 : index
    %c0_20 = arith.constant 0 : index
    %42 = vector.load %arg4[%c16_19, %c0_20] : memref<48x5xf32, #tpu.memory_space<vmem>>, vector<16x5xf32>
    %cst_21 = arith.constant dense<0.000000e+00> : vector<2x5xf32>
    %43 = tpu.matmul %41, %42, %cst_21 {dimension_numbers = #tpu.dot_dimension_numbers<[1], [0], [0], [1], [0, 0, 1, 1], [], []>} : vector<2x16xf32>, vector<16x5xf32>, vector<2x5xf32> -> vector<2x5xf32>
    %44 = arith.addf %26, %43 : vector<2x5xf32>
    %45 = vector.extract_strided_slice %8 {offsets = [0, 0, 0], sizes = [2, 12, 32], strides = [1, 1, 1]} : vector<2x16x32xf32> to vector<2x12x32xf32>
    %46 = vector.extract_strided_slice %8 {offsets = [0, 1, 0], sizes = [2, 12, 32], strides = [1, 1, 1]} : vector<2x16x32xf32> to vector<2x12x32xf32>
    %47 = vector.extract_strided_slice %8 {offsets = [0, 2, 0], sizes = [2, 12, 32], strides = [1, 1, 1]} : vector<2x16x32xf32> to vector<2x12x32xf32>
    %48 = vector.extract_strided_slice %8 {offsets = [0, 3, 0], sizes = [2, 12, 32], strides = [1, 1, 1]} : vector<2x16x32xf32> to vector<2x12x32xf32>
    %49 = vector.extract_strided_slice %8 {offsets = [0, 4, 0], sizes = [2, 12, 32], strides = [1, 1, 1]} : vector<2x16x32xf32> to vector<2x12x32xf32>
    %50 = tpu.concatenate %45, %46, %47, %48, %49 in 2 : vector<2x12x32xf32>, vector<2x12x32xf32>, vector<2x12x32xf32>, vector<2x12x32xf32>, vector<2x12x32xf32> -> vector<2x12x160xf32>
    %51 = vector.shape_cast %50 : vector<2x12x160xf32> to vector<24x160xf32>
    %c224 = arith.constant 224 : index
    %c0_22 = arith.constant 0 : index
    %52 = vector.load %arg2[%c224, %c0_22] : memref<384x16xf32, #tpu.memory_space<vmem>>, vector<160x16xf32>
    %c0_23 = arith.constant 0 : index
    %c32 = arith.constant 32 : index
    %53 = vector.load %arg3[%c0_23, %c32] : memref<1x53xf32, #tpu.memory_space<vmem>>, vector<1x16xf32>
    %cst_24 = arith.constant dense<0.000000e+00> : vector<24x16xf32>
    %54 = tpu.matmul %51, %52, %cst_24 {dimension_numbers = #tpu.dot_dimension_numbers<[1], [0], [0], [1], [0, 0, 1, 1], [], []>} : vector<24x160xf32>, vector<160x16xf32>, vector<24x16xf32> -> vector<24x16xf32>
    %55 = vector.broadcast %53 : vector<1x16xf32> to vector<24x16xf32>
    %56 = arith.addf %54, %55 : vector<24x16xf32>
    %cst_25 = arith.constant 0.000000e+00 : f32
    %57 = vector.broadcast %cst_25 : f32 to vector<24x16xf32>
    %58 = arith.maximumf %56, %57 : vector<24x16xf32>
    %59 = vector.shape_cast %58 : vector<24x16xf32> to vector<2x12x16xf32>
    %cst_26 = arith.constant dense<0xFF800000> : vector<2x16xf32>
    %60 = vector.multi_reduction <maximumf>, %59, %cst_26 [1] : vector<2x12x16xf32> to vector<2x16xf32>
    %c32_27 = arith.constant 32 : index
    %c0_28 = arith.constant 0 : index
    %61 = vector.load %arg4[%c32_27, %c0_28] : memref<48x5xf32, #tpu.memory_space<vmem>>, vector<16x5xf32>
    %cst_29 = arith.constant dense<0.000000e+00> : vector<2x5xf32>
    %62 = tpu.matmul %60, %61, %cst_29 {dimension_numbers = #tpu.dot_dimension_numbers<[1], [0], [0], [1], [0, 0, 1, 1], [], []>} : vector<2x16xf32>, vector<16x5xf32>, vector<2x5xf32> -> vector<2x5xf32>
    %63 = arith.addf %44, %62 : vector<2x5xf32>
    %c0_30 = arith.constant 0 : index
    %c48 = arith.constant 48 : index
    %64 = vector.load %arg3[%c0_30, %c48] : memref<1x53xf32, #tpu.memory_space<vmem>>, vector<1x5xf32>
    %65 = vector.broadcast %64 : vector<1x5xf32> to vector<2x5xf32>
    %66 = arith.addf %63, %65 : vector<2x5xf32>
    %c0_31 = arith.constant 0 : index
    %c0_32 = arith.constant 0 : index
    %67 = vector.load %arg5[%c0_31, %c0_32] : memref<2x5xf32, #tpu.memory_space<vmem>>, vector<2x5xf32>
    tpu.vector_store %arg5[%c0_31, %c0_32], %66 {strides = array<i32>} : memref<2x5xf32, #tpu.memory_space<vmem>>, vector<2x5xf32>,
    return
  }
}

</mosaic_0001>

<llo_original>
// kernel: tpu_custom_call.1
$region0: #{tpu_custom_call.1}
  #allocation0 [shape = 'u32[]', space=smem, size = 0x4, offset = 0x4, fixed_abs, tag = 'smem constant byte address 0x4 - core index']
  #allocation1 [shape = 'u32[144,128]{1,0:T(1,128)}', space=vmem, size = 0x12000, scoped, tag = 'internal scratch']
  %s0 = inlined_call_operand.vmem [shape: s32[32,1], index: 0, kind: input, shape index: {}]
  %s1 = inlined_call_operand.vmem [shape: f32[50,32], index: 1, kind: input, shape index: {}]
  %s2 = inlined_call_operand.vmem [shape: f32[384,16], index: 2, kind: input, shape index: {}]
  %s3 = inlined_call_operand.vmem [shape: f32[1,53], index: 3, kind: input, shape index: {}]
  %s4 = inlined_call_operand.vmem [shape: f32[48,5], index: 4, kind: input, shape index: {}]
  %s5 = inlined_call_operand.hbm [shape: f32[2,5], index: 5, kind: output, shape index: {}]
  %s6 = sld [smem:[#allocation0]]
  $region30: #{tpu_custom_call.1} parent=0
    _
  %s8 = ssub.s32 1, %s6
  %s9 = scalar_select 0, %s8, %s6
  $region1: #{tpu_custom_call.1} parent=0
    #allocation2 [shape = 'u8[1024]{0}', space=vmem, size = 0x400, scoped, tag = 'output window, operand 0, single buffered']
    #allocation3 [shape = 's32[1]{0}', space=sflag, size = 0x4, scoped, tag = 'scoped memory for tpu_custom_call.1']
    %10 = vsyncpa [#allocation3], 0
    // Predicated region
    $region2: #{tpu_custom_call.1} parent=1 // pred_check
      _
    $region3: #{tpu_custom_call.1} parent=1 // pred_check_branch
      %12 = sbr.rel (0) target = $region5
    $region4: #{tpu_custom_call.1} parent=1 // pred_region
      _
    $region5: #{tpu_custom_call.1} parent=1 // pred_fallthru
      _
    // Predicated region
    $region6: #{tpu_custom_call.1} parent=1 // pred_check
      _
    $region7: #{tpu_custom_call.1} parent=1 // pred_check_branch
      %14 = sbr.rel (0) target = $region9
    $region8: #{tpu_custom_call.1} parent=1 // pred_region
      _
    $region9: #{tpu_custom_call.1} parent=1 // pred_fallthru
      _
    // Predicated region
    $region10: #{tpu_custom_call.1} parent=1 // pred_check
      _
    $region11: #{tpu_custom_call.1} parent=1 // pred_check_branch
      %16 = sbr.rel (0) target = $region13
    $region12: #{tpu_custom_call.1} parent=1 // pred_region
      _
    $region13: #{tpu_custom_call.1} parent=1 // pred_fallthru
      _
    // Predicated region
    $region14: #{tpu_custom_call.1} parent=1 // pred_check
      _
    $region15: #{tpu_custom_call.1} parent=1 // pred_check_branch
      %18 = sbr.rel (0) target = $region17
    $region16: #{tpu_custom_call.1} parent=1 // pred_region
      _
    $region17: #{tpu_custom_call.1} parent=1 // pred_fallthru
      _
    // Predicated region
    $region18: #{tpu_custom_call.1} parent=1 // pred_check
      _
    $region19: #{tpu_custom_call.1} parent=1 // pred_check_branch
      %20 = sbr.rel (0) target = $region21
    $region20: #{tpu_custom_call.1} parent=1 // pred_region
      _
    $region21: #{tpu_custom_call.1} parent=1 // pred_fallthru
      _
    %v21 = vld [vmem:[%s0] sm:$0xff]
    %v22 = vld [vmem:[%s0 + $0x8] sm:$0xff]
    %v23 = vld [vmem:[%s0 + $0x10] sm:$0xff]
    %v24 = vld [vmem:[%s0 + $0x18] sm:$0xff]
    %v25 = vlaneseq
    %v26 = vand.u32 %v25, 127
    %27 = vset.pattern.permute.xlu0 0
    %28 = vperm.xlu0 %27, %v21
    %v29 = vpop.permute.xlu0 %28
    %30 = vset.pattern.permute.xlu0 0
    %31 = vperm.xlu0 %30, %v22
    %v32 = vpop.permute.xlu0 %31
    %33 = vset.pattern.permute.xlu0 0
    %34 = vperm.xlu0 %33, %v23
    %v35 = vpop.permute.xlu0 %34
    %36 = vset.pattern.permute.xlu0 0
    %37 = vperm.xlu0 %36, %v24
    %v38 = vpop.permute.xlu0 %37
    %vm39 = vcmp.eq.s32.totalorder %v29, %v26
    %vm40 = vcmp.eq.s32.totalorder %v32, %v26
    %vm41 = vcmp.eq.s32.totalorder %v35, %v26
    %vm42 = vcmp.eq.s32.totalorder %v38, %v26
    %v43 = vsel %vm39, 1, 0
    %v44 = vsel %vm40, 1, 0
    %v45 = vsel %vm41, 1, 0
    %v46 = vsel %vm42, 1, 0
    %v47 = vcvt.s32.f32 %v43
    %v48 = vcvt.s32.f32 %v44
    %v49 = vcvt.s32.f32 %v45
    %v50 = vcvt.s32.f32 %v46
    %v51 = vld [vmem:[%s1] sm:$0xff]
    %v52 = vld [vmem:[%s1 + $0x8] sm:$0xff]
    %v53 = vld [vmem:[%s1 + $0x10] sm:$0xff]
    %v54 = vld [vmem:[%s1 + $0x18] sm:$0xff]
    %v55 = vld [vmem:[%s1 + $0x20] sm:$0xff]
    %v56 = vld [vmem:[%s1 + $0x28] sm:$0xff]
    %v57 = vld [vmem:[%s1 + $0x30] sm:$0x3]
    %vm58 = vcmask 408576
    %v60 = vsel %vm58, %v47, 0
    %v63 = vsel %vm58, %v48, 0
    %v66 = vsel %vm58, %v49, 0
    %v69 = vsel %vm58, %v50, 0
    %vm71 = vcmask 1041408
    %v73 = vsel %vm71, %v57, 0
    %75 = vmatprep.subr.mxu0 0.0
    %76 = vmatpush1.msra.mxu0 0.0
    %77 = vmatprep.subr.mxu0 0.0
    %78 = vmatpush1.msra.mxu0 0.0
    %79 = vmatprep.subr.mxu0 0.0
    %80 = vmatpush1.msra.mxu0 0.0
    %81 = vmatprep.subr.mxu0 0.0
    %82 = vmatpush1.msra.mxu0 0.0
    %83 = vmatprep.subr.mxu0 0.0
    %84 = vmatpush1.msra.mxu0 0.0
    %85 = vmatprep.subr.mxu0 0.0
    %86 = vmatpush1.msra.mxu0 0.0
    %87 = vmatprep.subr.mxu0 0.0
    %88 = vmatpush1.msra.mxu0 0.0
    %89 = vmatprep.subr.mxu0 0.0
    %90 = vmatpush1.msra.mxu0 0.0
    %91 = vmatprep.subr.mxu0 0.0
    %92 = vmatpush1.msra.mxu0 0.0
    %93 = vmatprep.subr.mxu0 0.0
    %94 = vmatpush1.msra.mxu0 %v73
    %95 = vmatprep.subr.mxu0 0.0
    %96 = vmatpush1.msra.mxu0 %v56
    %97 = vmatprep.subr.mxu0 0.0
    %98 = vmatpush1.msra.mxu0 %v55
    %99 = vmatprep.subr.mxu0 0.0
    %100 = vmatpush1.msra.mxu0 %v54
    %101 = vmatprep.subr.mxu0 0.0
    %102 = vmatpush1.msra.mxu0 %v53
    %103 = vmatprep.subr.mxu0 0.0
    %104 = vmatpush1.msra.mxu0 %v52
    %105 = vmatprep.subr.mxu0 0.0
    %106 = vmatpush1.msra.mxu0 %v51
    %107 = vmatprep.subr.mxu0 0.0
    %108 = vmatpush2.msra.mxu0 0.0
    %109 = vmatprep.subr.mxu0 0.0
    %110 = vmatpush2.msra.mxu0 0.0
    %111 = vmatprep.subr.mxu0 0.0
    %112 = vmatpush2.msra.mxu0 0.0
    %113 = vmatprep.subr.mxu0 0.0
    %114 = vmatpush2.msra.mxu0 0.0
    %115 = vmatprep.subr.mxu0 0.0
    %116 = vmatpush2.msra.mxu0 0.0
    %117 = vmatprep.subr.mxu0 0.0
    %118 = vmatpush2.msra.mxu0 0.0
    %119 = vmatprep.subr.mxu0 0.0
    %120 = vmatpush2.msra.mxu0 0.0
    %121 = vmatprep.subr.mxu0 0.0
    %122 = vmatpush2.msra.mxu0 0.0
    %123 = vmatprep.subr.mxu0 0.0
    %124 = vmatpush2.msra.mxu0 0.0
    %125 = vmatprep.subr.mxu0 0.0
    %126 = vmatpush2.msra.mxu0 0.0
    %127 = vmatprep.subr.mxu0 0.0
    %128 = vmatpush2.msra.mxu0 0.0
    %129 = vmatprep.subr.mxu0 0.0
    %130 = vmatpush2.msra.mxu0 0.0
    %131 = vmatprep.subr.mxu0 0.0
    %132 = vmatpush2.msra.mxu0 0.0
    %133 = vmatprep.subr.mxu0 0.0
    %134 = vmatpush2.msra.mxu0 0.0
    %135 = vmatprep.subr.mxu0 0.0
    %136 = vmatpush2.msra.mxu0 0.0
    %137 = vmatprep.subr.mxu0 0.0
    %138 = vmatpush2.msra.mxu0 0.0
    %139 = vmatprep.mubr.f32.mxu0 0.0
    %140 = vmatmul.mubr.f32.gmra.mxu0 %v60
    %v141 = vpop.f32.mrf.mxu0
    %v142 = vadd.f32 0.0, %v141
    %v143 = vpop.f32.mrf.mxu0
    %144 = vmatprep.mubr.f32.mxu0 0.0
    %145 = vmatmul.mubr.f32.gmra.mxu0 %v63
    %v146 = vpop.f32.mrf.mxu0
    %v147 = vadd.f32 0.0, %v146
    %v148 = vpop.f32.mrf.mxu0
    %149 = vmatprep.mubr.f32.mxu0 0.0
    %150 = vmatmul.mubr.f32.gmra.mxu0 %v66
    %v151 = vpop.f32.mrf.mxu0
    %v152 = vadd.f32 0.0, %v151
    %v153 = vpop.f32.mrf.mxu0
    %154 = vmatprep.mubr.f32.mxu0 0.0
    %155 = vmatmul.mubr.f32.gmra.mxu0 %v69
    %v156 = vpop.f32.mrf.mxu0
    %v157 = vadd.f32 0.0, %v156
    %v158 = vpop.f32.mrf.mxu0
    %159 = vdwg.mxu0
    %vm164 = vcmask 1046528
    %v165 = vrot.slane %v142, 1
    %v166 = vrot.slane %v147, 1
    %v167 = vsel %vm164, %v165, %v166
    %v168 = vrot.slane %v152, 1
    %v169 = vrot.slane %v157, 1
    %v170 = vsel %vm164, %v168, %v169
    %171 = vrot.lane.b32.xlu0 %v167, 32
    %v172 = vpop.permute.xlu0 %171
    %173 = vrot.lane.b32.xlu0 %v166, 32
    %v174 = vpop.permute.xlu0 %173
    %175 = vrot.lane.b32.xlu0 %v170, 32
    %v176 = vpop.permute.xlu0 %175
    %177 = vrot.lane.b32.xlu0 %v169, 32
    %v178 = vpop.permute.xlu0 %177
    %vm183 = vcmask 1045504
    %v184 = vrot.slane %v142, 2
    %v185 = vrot.slane %v147, 2
    %v186 = vsel %vm183, %v184, %v185
    %v187 = vrot.slane %v152, 2
    %v188 = vrot.slane %v157, 2
    %v189 = vsel %vm183, %v187, %v188
    %190 = vrot.lane.b32.xlu0 %v186, 64
    %v191 = vpop.permute.xlu0 %190
    %192 = vrot.lane.b32.xlu0 %v185, 64
    %v193 = vpop.permute.xlu0 %192
    %194 = vrot.lane.b32.xlu0 %v189, 64
    %v195 = vpop.permute.xlu0 %194
    %196 = vrot.lane.b32.xlu0 %v188, 64
    %v197 = vpop.permute.xlu0 %196
    %vm202 = vcmask 261120
    %v203 = vsel %vm202, %v142, %v172
    %v204 = vsel %vm202, %v147, %v174
    %v205 = vsel %vm202, %v152, %v176
    %v206 = vsel %vm202, %v157, %v178
    %vm207 = vcmask 523264
    %v208 = vsel %vm207, %v203, %v191
    %v209 = vsel %vm207, %v204, %v193
    %v210 = vsel %vm207, %v205, %v195
    %v211 = vsel %vm207, %v206, %v197
    %v216 = vcombine.high %v208, %v208
    %v218 = vunpack.c.l.s4 1983009808
    %v219 = vunpack.c.0.s8 %v218
    %v220 = vlaneseq
    %v221 = vshrl.u32 %v220, 7
    %v222 = vsub.s32 %v219, %v221
    %v223 = vrot.slane %v208, %v222
    %v225 = vunpack.c.l.s4 1983009808
    %v226 = vunpack.c.0.s8 %v225
    %v227 = vlaneseq
    %v228 = vshrl.u32 %v227, 7
    %v229 = vsub.s32 %v226, %v228
    %v230 = vrot.slane %v216, %v229
    %v231 = vcombine.high %v223, %v223
    %v232 = vcombine.high %v230, %v230
    %v233 = vcombine.high %v209, %v209
    %v235 = vunpack.c.l.s4 1983009808
    %v236 = vunpack.c.0.s8 %v235
    %v237 = vlaneseq
    %v238 = vshrl.u32 %v237, 7
    %v239 = vsub.s32 %v236, %v238
    %v240 = vrot.slane %v209, %v239
    %v242 = vunpack.c.l.s4 1983009808
    %v243 = vunpack.c.0.s8 %v242
    %v244 = vlaneseq
    %v245 = vshrl.u32 %v244, 7
    %v246 = vsub.s32 %v243, %v245
    %v247 = vrot.slane %v233, %v246
    %v248 = vcombine.high %v240, %v240
    %v249 = vcombine.high %v210, %v210
    %v251 = vunpack.c.l.s4 1983009808
    %v252 = vunpack.c.0.s8 %v251
    %v253 = vlaneseq
    %v254 = vshrl.u32 %v253, 7
    %v255 = vsub.s32 %v252, %v254
    %v256 = vrot.slane %v210, %v255
    %v258 = vunpack.c.l.s4 1983009808
    %v259 = vunpack.c.0.s8 %v258
    %v260 = vlaneseq
    %v261 = vshrl.u32 %v260, 7
    %v262 = vsub.s32 %v259, %v261
    %v263 = vrot.slane %v249, %v262
    %v264 = vcombine.high %v256, %v256
    %v265 = vcombine.high %v263, %v263
    %v266 = vcombine.high %v211, %v211
    %v268 = vunpack.c.l.s4 1983009808
    %v269 = vunpack.c.0.s8 %v268
    %v270 = vlaneseq
    %v271 = vshrl.u32 %v270, 7
    %v272 = vsub.s32 %v269, %v271
    %v273 = vrot.slane %v211, %v272
    %v275 = vunpack.c.l.s4 1983009808
    %v276 = vunpack.c.0.s8 %v275
    %v277 = vlaneseq
    %v278 = vshrl.u32 %v277, 7
    %v279 = vsub.s32 %v276, %v278
    %v280 = vrot.slane %v266, %v279
    %v281 = vcombine.high %v273, %v273
    %v282 = vld [vmem:[%s2] sm:$0xff]
    %v283 = vld [vmem:[%s2 + $0x8] sm:$0xff]
    %v284 = vld [vmem:[%s2 + $0x10] sm:$0xff]
    %v285 = vld [vmem:[%s2 + $0x18] sm:$0xff]
    %v286 = vld [vmem:[%s2 + $0x20] sm:$0xff]
    %v287 = vld [vmem:[%s2 + $0x28] sm:$0xff]
    %v288 = vld [vmem:[%s2 + $0x30] sm:$0xff]
    %v289 = vld [vmem:[%s2 + $0x38] sm:$0xff]
    %v290 = vld [vmem:[%s2 + $0x40] sm:$0xff]
    %v291 = vld [vmem:[%s2 + $0x48] sm:$0xff]
    %v292 = vld [vmem:[%s2 + $0x50] sm:$0xff]
    %v293 = vld [vmem:[%s2 + $0x58] sm:$0xff]
    %v294 = vld [vmem:[%s3] sm:$0x1]
    %v296 = vlaneseq
    %v297 = vshrl.u32 %v296, 7
    %v298 = vsub.s32 0, %v297
    %v299 = vrot.slane %v294, %v298
    %v301 = vcombine.low %v223, %v231
    %v302 = vcombine.low %v230, %v232
    %v304 = vunpack.c.l.s4 1983009808
    %v305 = vunpack.c.0.s8 %v304
    %v306 = vlaneseq
    %v307 = vshrl.u32 %v306, 7
    %v308 = vsub.s32 %v305, %v307
    %v309 = vrot.slane %v301, %v308
    %v311 = vunpack.c.l.s4 1983009808
    %v312 = vunpack.c.0.s8 %v311
    %v313 = vlaneseq
    %v314 = vshrl.u32 %v313, 7
    %v315 = vsub.s32 %v312, %v314
    %v316 = vrot.slane %v302, %v315
    %v317 = vcombine.low %v309, %v316
    %v318 = vcombine.low %v240, %v248
    %v319 = vcombine.low %v247, %v256
    %v321 = vunpack.c.l.s4 1983009808
    %v322 = vunpack.c.0.s8 %v321
    %v323 = vlaneseq
    %v324 = vshrl.u32 %v323, 7
    %v325 = vsub.s32 %v322, %v324
    %v326 = vrot.slane %v318, %v325
    %v328 = vunpack.c.l.s4 1983009808
    %v329 = vunpack.c.0.s8 %v328
    %v330 = vlaneseq
    %v331 = vshrl.u32 %v330, 7
    %v332 = vsub.s32 %v329, %v331
    %v333 = vrot.slane %v319, %v332
    %v334 = vcombine.low %v326, %v333
    %v335 = vcombine.low %v264, %v263
    %v336 = vcombine.low %v265, %v273
    %v338 = vunpack.c.l.s4 1983009808
    %v339 = vunpack.c.0.s8 %v338
    %v340 = vlaneseq
    %v341 = vshrl.u32 %v340, 7
    %v342 = vsub.s32 %v339, %v341
    %v343 = vrot.slane %v335, %v342
    %v345 = vunpack.c.l.s4 1983009808
    %v346 = vunpack.c.0.s8 %v345
    %v347 = vlaneseq
    %v348 = vshrl.u32 %v347, 7
    %v349 = vsub.s32 %v346, %v348
    %v350 = vrot.slane %v336, %v349
    %v351 = vcombine.low %v343, %v350
    %v352 = vcombine.low %v281, %v280
    %v354 = vunpack.c.l.s4 1983009808
    %v355 = vunpack.c.0.s8 %v354
    %v356 = vlaneseq
    %v357 = vshrl.u32 %v356, 7
    %v358 = vsub.s32 %v355, %v357
    %v359 = vrot.slane %v352, %v358
    %vm360 = vcmask 785408
    %v361 = vsel %vm360, %v317, 0
    %v363 = vsel %vm360, %v334, 0
    %v365 = vsel %vm360, %v351, 0
    %v367 = vsel %vm360, %v359, 0
    %369 = vmatprep.subr.mxu0 0.0
    %370 = vmatpush1.msra.mxu0 0.0
    %371 = vmatprep.subr.mxu0 0.0
    %372 = vmatpush1.msra.mxu0 0.0
    %373 = vmatprep.subr.mxu0 0.0
    %374 = vmatpush1.msra.mxu0 0.0
    %375 = vmatprep.subr.mxu0 0.0
    %376 = vmatpush1.msra.mxu0 0.0
    %377 = vmatprep.subr.mxu0 0.0
    %378 = vmatpush1.msra.mxu0 %v293
    %379 = vmatprep.subr.mxu0 0.0
    %380 = vmatpush1.msra.mxu0 %v292
    %381 = vmatprep.subr.mxu0 0.0
    %382 = vmatpush1.msra.mxu0 %v291
    %383 = vmatprep.subr.mxu0 0.0
    %384 = vmatpush1.msra.mxu0 %v290
    %385 = vmatprep.subr.mxu0 0.0
    %386 = vmatpush1.msra.mxu0 %v289
    %387 = vmatprep.subr.mxu0 0.0
    %388 = vmatpush1.msra.mxu0 %v288
    %389 = vmatprep.subr.mxu0 0.0
    %390 = vmatpush1.msra.mxu0 %v287
    %391 = vmatprep.subr.mxu0 0.0
    %392 = vmatpush1.msra.mxu0 %v286
    %393 = vmatprep.subr.mxu0 0.0
    %394 = vmatpush1.msra.mxu0 %v285
    %395 = vmatprep.subr.mxu0 0.0
    %396 = vmatpush1.msra.mxu0 %v284
    %397 = vmatprep.subr.mxu0 0.0
    %398 = vmatpush1.msra.mxu0 %v283
    %399 = vmatprep.subr.mxu0 0.0
    %400 = vmatpush1.msra.mxu0 %v282
    %401 = vmatprep.subr.mxu0 0.0
    %402 = vmatpush2.msra.mxu0 0.0
    %403 = vmatprep.subr.mxu0 0.0
    %404 = vmatpush2.msra.mxu0 0.0
    %405 = vmatprep.subr.mxu0 0.0
    %406 = vmatpush2.msra.mxu0 0.0
    %407 = vmatprep.subr.mxu0 0.0
    %408 = vmatpush2.msra.mxu0 0.0
    %409 = vmatprep.subr.mxu0 0.0
    %410 = vmatpush2.msra.mxu0 0.0
    %411 = vmatprep.subr.mxu0 0.0
    %412 = vmatpush2.msra.mxu0 0.0
    %413 = vmatprep.subr.mxu0 0.0
    %414 = vmatpush2.msra.mxu0 0.0
    %415 = vmatprep.subr.mxu0 0.0
    %416 = vmatpush2.msra.mxu0 0.0
    %417 = vmatprep.subr.mxu0 0.0
    %418 = vmatpush2.msra.mxu0 0.0
    %419 = vmatprep.subr.mxu0 0.0
    %420 = vmatpush2.msra.mxu0 0.0
    %421 = vmatprep.subr.mxu0 0.0
    %422 = vmatpush2.msra.mxu0 0.0
    %423 = vmatprep.subr.mxu0 0.0
    %424 = vmatpush2.msra.mxu0 0.0
    %425 = vmatprep.subr.mxu0 0.0
    %426 = vmatpush2.msra.mxu0 0.0
    %427 = vmatprep.subr.mxu0 0.0
    %428 = vmatpush2.msra.mxu0 0.0
    %429 = vmatprep.subr.mxu0 0.0
    %430 = vmatpush2.msra.mxu0 0.0
    %431 = vmatprep.subr.mxu0 0.0
    %432 = vmatpush2.msra.mxu0 0.0
    %433 = vmatprep.mubr.f32.mxu0 0.0
    %434 = vmatmul.mubr.f32.gmra.mxu0 %v361
    %v435 = vpop.f32.mrf.mxu0
    %v436 = vadd.f32 %v299, %v435
    %v437 = vpop.f32.mrf.mxu0
    %438 = vmatprep.mubr.f32.mxu0 0.0
    %439 = vmatmul.mubr.f32.gmra.mxu0 %v363
    %v440 = vpop.f32.mrf.mxu0
    %v441 = vadd.f32 %v299, %v440
    %v442 = vpop.f32.mrf.mxu0
    %443 = vmatprep.mubr.f32.mxu0 0.0
    %444 = vmatmul.mubr.f32.gmra.mxu0 %v365
    %v445 = vpop.f32.mrf.mxu0
    %v446 = vadd.f32 %v299, %v445
    %v447 = vpop.f32.mrf.mxu0
    %448 = vmatprep.mubr.f32.mxu0 0.0
    %449 = vmatmul.mubr.f32.gmra.mxu0 %v367
    %v450 = vpop.f32.mrf.mxu0
    %v451 = vadd.f32 %v299, %v450
    %v452 = vpop.f32.mrf.mxu0
    %453 = vdwg.mxu0
    %v454 = vmax.f32 %v436, 0.0
    %v455 = vmax.f32 %v441, 0.0
    %v456 = vmax.f32 %v446, 0.0
    %v457 = vmax.f32 %v451, 0.0
    %v462 = vcombine.high %v454, %v454
    %v464 = vunpack.c.l.s4 1983009808
    %v465 = vunpack.c.0.s8 %v464
    %v466 = vlaneseq
    %v467 = vshrl.u32 %v466, 7
    %v468 = vsub.s32 %v465, %v467
    %v469 = vrot.slane %v454, %v468
    %v471 = vunpack.c.l.s4 1983009808
    %v472 = vunpack.c.0.s8 %v471
    %v473 = vlaneseq
    %v474 = vshrl.u32 %v473, 7
    %v475 = vsub.s32 %v472, %v474
    %v476 = vrot.slane %v462, %v475
    %v477 = vcombine.high %v469, %v469
    %v478 = vcombine.high %v476, %v476
    %v479 = vcombine.high %v455, %v455
    %v481 = vunpack.c.l.s4 1983009808
    %v482 = vunpack.c.0.s8 %v481
    %v483 = vlaneseq
    %v484 = vshrl.u32 %v483, 7
    %v485 = vsub.s32 %v482, %v484
    %v486 = vrot.slane %v455, %v485
    %v488 = vunpack.c.l.s4 1983009808
    %v489 = vunpack.c.0.s8 %v488
    %v490 = vlaneseq
    %v491 = vshrl.u32 %v490, 7
    %v492 = vsub.s32 %v489, %v491
    %v493 = vrot.slane %v479, %v492
    %v494 = vcombine.high %v486, %v486
    %v495 = vcombine.high %v493, %v493
    %v496 = vcombine.high %v456, %v456
    %v498 = vunpack.c.l.s4 1983009808
    %v499 = vunpack.c.0.s8 %v498
    %v500 = vlaneseq
    %v501 = vshrl.u32 %v500, 7
    %v502 = vsub.s32 %v499, %v501
    %v503 = vrot.slane %v456, %v502
    %v505 = vunpack.c.l.s4 1983009808
    %v506 = vunpack.c.0.s8 %v505
    %v507 = vlaneseq
    %v508 = vshrl.u32 %v507, 7
    %v509 = vsub.s32 %v506, %v508
    %v510 = vrot.slane %v496, %v509
    %v511 = vcombine.high %v503, %v503
    %v512 = vcombine.high %v510, %v510
    %v514 = vunpack.c.l.s4 1983009808
    %v515 = vunpack.c.0.s8 %v514
    %v516 = vlaneseq
    %v517 = vshrl.u32 %v516, 7
    %v518 = vsub.s32 %v515, %v517
    %v519 = vrot.slane %v457, %v518
    %v520 = vcombine.high %v519, %v519
    %v521 = vcombine.low %v469, %v477
    %v522 = vcombine.low %v476, %v478
    %v524 = vunpack.c.l.s4 1983009808
    %v525 = vunpack.c.0.s8 %v524
    %v526 = vlaneseq
    %v527 = vshrl.u32 %v526, 7
    %v528 = vsub.s32 %v525, %v527
    %v529 = vrot.slane %v521, %v528
    %v531 = vunpack.c.l.s4 1983009808
    %v532 = vunpack.c.0.s8 %v531
    %v533 = vlaneseq
    %v534 = vshrl.u32 %v533, 7
    %v535 = vsub.s32 %v532, %v534
    %v536 = vrot.slane %v522, %v535
    %v537 = vcombine.low %v529, %v536
    %v538 = vcombine.low %v486, %v494
    %v540 = vunpack.c.l.s4 1983009808
    %v541 = vunpack.c.0.s8 %v540
    %v542 = vlaneseq
    %v543 = vshrl.u32 %v542, 7
    %v544 = vsub.s32 %v541, %v543
    %v545 = vrot.slane %v538, %v544
    %v547 = vunpack.c.l.s4 1983009808
    %v548 = vunpack.c.0.s8 %v547
    %v549 = vlaneseq
    %v550 = vshrl.u32 %v549, 7
    %v551 = vsub.s32 %v548, %v550
    %v552 = vrot.slane %v493, %v551
    %v553 = vcombine.low %v545, %v552
    %v554 = vcombine.low %v495, %v503
    %v555 = vcombine.low %v511, %v510
    %v557 = vunpack.c.l.s4 1983009808
    %v558 = vunpack.c.0.s8 %v557
    %v559 = vlaneseq
    %v560 = vshrl.u32 %v559, 7
    %v561 = vsub.s32 %v558, %v560
    %v562 = vrot.slane %v554, %v561
    %v564 = vunpack.c.l.s4 1983009808
    %v565 = vunpack.c.0.s8 %v564
    %v566 = vlaneseq
    %v567 = vshrl.u32 %v566, 7
    %v568 = vsub.s32 %v565, %v567
    %v569 = vrot.slane %v555, %v568
    %v570 = vcombine.low %v562, %v569
    %v571 = vcombine.low %v512, %v519
    %v573 = vunpack.c.l.s4 1983009808
    %v574 = vunpack.c.0.s8 %v573
    %v575 = vlaneseq
    %v576 = vshrl.u32 %v575, 7
    %v577 = vsub.s32 %v574, %v576
    %v578 = vrot.slane %v571, %v577
    %v580 = vunpack.c.l.s4 1983009808
    %v581 = vunpack.c.0.s8 %v580
    %v582 = vlaneseq
    %v583 = vshrl.u32 %v582, 7
    %v584 = vsub.s32 %v581, %v583
    %v585 = vrot.slane %v520, %v584
    %v586 = vcombine.low %v578, %v585
    %vm591 = vcmask 130048
    %v592 = vsel %vm591, %v537, -inf
    %vm593 = vcmask 128000
    %v594 = vsel %vm593, %v553, -inf
    %v595 = vmax.f32 %v592, %v594
    %v596 = vrot.slane %v595, 4
    %v597 = vmax.f32 %v595, %v596
    %v598 = vrot.slane %v597, 2
    %v599 = vmax.f32 %v597, %v598
    %v600 = vrot.slane %v599, 1
    %v601 = vmax.f32 %v599, %v600
    %v602 = vsel %vm591, %v570, -inf
    %v603 = vsel %vm593, %v586, -inf
    %v604 = vmax.f32 %v602, %v603
    %v605 = vrot.slane %v604, 4
    %v606 = vmax.f32 %v604, %v605
    %v607 = vrot.slane %v606, 2
    %v608 = vmax.f32 %v606, %v607
    %v609 = vrot.slane %v608, 1
    %v610 = vmax.f32 %v608, %v609
    %v611 = vld [vmem:[%s4] sm:$0xff]
    %v612 = vld [vmem:[%s4 + $0x8] sm:$0xff]
    %vm613 = vcmask 1044480
    %v614 = vrot.slane %v142, 3
    %v615 = vrot.slane %v147, 3
    %v616 = vsel %vm613, %v614, %v615
    %v617 = vrot.slane %v152, 3
    %v618 = vrot.slane %v157, 3
    %v619 = vsel %vm613, %v617, %v618
    %620 = vrot.lane.b32.xlu0 %v616, 96
    %v621 = vpop.permute.xlu0 %620
    %622 = vrot.lane.b32.xlu0 %v615, 96
    %v623 = vpop.permute.xlu0 %622
    %624 = vrot.lane.b32.xlu0 %v619, 96
    %v625 = vpop.permute.xlu0 %624
    %626 = vrot.lane.b32.xlu0 %v618, 96
    %v627 = vpop.permute.xlu0 %626
    %v632 = vsel %vm360, %v208, %v621
    %v633 = vsel %vm360, %v209, %v623
    %v634 = vsel %vm360, %v210, %v625
    %v635 = vsel %vm360, %v211, %v627
    %v640 = vcombine.high %v632, %v632
    %v642 = vunpack.c.l.s4 1966171168
    %v643 = vunpack.c.0.s8 %v642
    %v644 = vlaneseq
    %v645 = vshrl.u32 %v644, 7
    %v646 = vsub.s32 %v643, %v645
    %v647 = vrot.slane %v632, %v646
    %v649 = vunpack.c.l.s4 1966171168
    %v650 = vunpack.c.0.s8 %v649
    %v651 = vlaneseq
    %v652 = vshrl.u32 %v651, 7
    %v653 = vsub.s32 %v650, %v652
    %v654 = vrot.slane %v640, %v653
    %v655 = vcombine.high %v647, %v647
    %v656 = vcombine.high %v654, %v654
    %v658 = vunpack.c.l.s4 1966171168
    %v659 = vunpack.c.0.s8 %v658
    %v660 = vlaneseq
    %v661 = vshrl.u32 %v660, 7
    %v662 = vsub.s32 %v659, %v661
    %v663 = vrot.slane %v647, %v662
    %v665 = vunpack.c.l.s4 1966171168
    %v666 = vunpack.c.0.s8 %v665
    %v667 = vlaneseq
    %v668 = vshrl.u32 %v667, 7
    %v669 = vsub.s32 %v666, %v668
    %v670 = vrot.slane %v654, %v669
    %v672 = vunpack.c.l.s4 1966171168
    %v673 = vunpack.c.0.s8 %v672
    %v674 = vlaneseq
    %v675 = vshrl.u32 %v674, 7
    %v676 = vsub.s32 %v673, %v675
    %v677 = vrot.slane %v655, %v676
    %v679 = vunpack.c.l.s4 1966171168
    %v680 = vunpack.c.0.s8 %v679
    %v681 = vlaneseq
    %v682 = vshrl.u32 %v681, 7
    %v683 = vsub.s32 %v680, %v682
    %v684 = vrot.slane %v656, %v683
    %v685 = vcombine.high %v663, %v663
    %v686 = vcombine.high %v670, %v670
    %v687 = vcombine.high %v677, %v677
    %v688 = vcombine.high %v684, %v684
    %v689 = vcombine.high %v633, %v633
    %v691 = vunpack.c.l.s4 1966171168
    %v692 = vunpack.c.0.s8 %v691
    %v693 = vlaneseq
    %v694 = vshrl.u32 %v693, 7
    %v695 = vsub.s32 %v692, %v694
    %v696 = vrot.slane %v633, %v695
    %v698 = vunpack.c.l.s4 1966171168
    %v699 = vunpack.c.0.s8 %v698
    %v700 = vlaneseq
    %v701 = vshrl.u32 %v700, 7
    %v702 = vsub.s32 %v699, %v701
    %v703 = vrot.slane %v689, %v702
    %v704 = vcombine.high %v696, %v696
    %v706 = vunpack.c.l.s4 1966171168
    %v707 = vunpack.c.0.s8 %v706
    %v708 = vlaneseq
    %v709 = vshrl.u32 %v708, 7
    %v710 = vsub.s32 %v707, %v709
    %v711 = vrot.slane %v696, %v710
    %v713 = vunpack.c.l.s4 1966171168
    %v714 = vunpack.c.0.s8 %v713
    %v715 = vlaneseq
    %v716 = vshrl.u32 %v715, 7
    %v717 = vsub.s32 %v714, %v716
    %v718 = vrot.slane %v703, %v717
    %v720 = vunpack.c.l.s4 1966171168
    %v721 = vunpack.c.0.s8 %v720
    %v722 = vlaneseq
    %v723 = vshrl.u32 %v722, 7
    %v724 = vsub.s32 %v721, %v723
    %v725 = vrot.slane %v704, %v724
    %v726 = vcombine.high %v711, %v711
    %v727 = vcombine.high %v725, %v725
    %v728 = vcombine.high %v634, %v634
    %v730 = vunpack.c.l.s4 1966171168
    %v731 = vunpack.c.0.s8 %v730
    %v732 = vlaneseq
    %v733 = vshrl.u32 %v732, 7
    %v734 = vsub.s32 %v731, %v733
    %v735 = vrot.slane %v634, %v734
    %v737 = vunpack.c.l.s4 1966171168
    %v738 = vunpack.c.0.s8 %v737
    %v739 = vlaneseq
    %v740 = vshrl.u32 %v739, 7
    %v741 = vsub.s32 %v738, %v740
    %v742 = vrot.slane %v728, %v741
    %v743 = vcombine.high %v735, %v735
    %v744 = vcombine.high %v742, %v742
    %v746 = vunpack.c.l.s4 1966171168
    %v747 = vunpack.c.0.s8 %v746
    %v748 = vlaneseq
    %v749 = vshrl.u32 %v748, 7
    %v750 = vsub.s32 %v747, %v749
    %v751 = vrot.slane %v735, %v750
    %v753 = vunpack.c.l.s4 1966171168
    %v754 = vunpack.c.0.s8 %v753
    %v755 = vlaneseq
    %v756 = vshrl.u32 %v755, 7
    %v757 = vsub.s32 %v754, %v756
    %v758 = vrot.slane %v742, %v757
    %v760 = vunpack.c.l.s4 1966171168
    %v761 = vunpack.c.0.s8 %v760
    %v762 = vlaneseq
    %v763 = vshrl.u32 %v762, 7
    %v764 = vsub.s32 %v761, %v763
    %v765 = vrot.slane %v743, %v764
    %v767 = vunpack.c.l.s4 1966171168
    %v768 = vunpack.c.0.s8 %v767
    %v769 = vlaneseq
    %v770 = vshrl.u32 %v769, 7
    %v771 = vsub.s32 %v768, %v770
    %v772 = vrot.slane %v744, %v771
    %v773 = vcombine.high %v751, %v751
    %v774 = vcombine.high %v758, %v758
    %v775 = vcombine.high %v765, %v765
    %v776 = vcombine.high %v772, %v772
    %v777 = vcombine.high %v635, %v635
    %v779 = vunpack.c.l.s4 1966171168
    %v780 = vunpack.c.0.s8 %v779
    %v781 = vlaneseq
    %v782 = vshrl.u32 %v781, 7
    %v783 = vsub.s32 %v780, %v782
    %v784 = vrot.slane %v635, %v783
    %v786 = vunpack.c.l.s4 1966171168
    %v787 = vunpack.c.0.s8 %v786
    %v788 = vlaneseq
    %v789 = vshrl.u32 %v788, 7
    %v790 = vsub.s32 %v787, %v789
    %v791 = vrot.slane %v777, %v790
    %v792 = vcombine.high %v784, %v784
    %v794 = vunpack.c.l.s4 1966171168
    %v795 = vunpack.c.0.s8 %v794
    %v796 = vlaneseq
    %v797 = vshrl.u32 %v796, 7
    %v798 = vsub.s32 %v795, %v797
    %v799 = vrot.slane %v784, %v798
    %v801 = vunpack.c.l.s4 1966171168
    %v802 = vunpack.c.0.s8 %v801
    %v803 = vlaneseq
    %v804 = vshrl.u32 %v803, 7
    %v805 = vsub.s32 %v802, %v804
    %v806 = vrot.slane %v791, %v805
    %v808 = vunpack.c.l.s4 1966171168
    %v809 = vunpack.c.0.s8 %v808
    %v810 = vlaneseq
    %v811 = vshrl.u32 %v810, 7
    %v812 = vsub.s32 %v809, %v811
    %v813 = vrot.slane %v792, %v812
    %v814 = vcombine.high %v799, %v799
    %v815 = vcombine.high %v813, %v813
    %v816 = vld [vmem:[%s2 + $0x60] sm:$0xff]
    %v817 = vld [vmem:[%s2 + $0x68] sm:$0xff]
    %v818 = vld [vmem:[%s2 + $0x70] sm:$0xff]
    %v819 = vld [vmem:[%s2 + $0x78] sm:$0xff]
    %v820 = vld [vmem:[%s2 + $0x80] sm:$0xff]
    %v821 = vld [vmem:[%s2 + $0x88] sm:$0xff]
    %v822 = vld [vmem:[%s2 + $0x90] sm:$0xff]
    %v823 = vld [vmem:[%s2 + $0x98] sm:$0xff]
    %v824 = vld [vmem:[%s2 + $0xa0] sm:$0xff]
    %v825 = vld [vmem:[%s2 + $0xa8] sm:$0xff]
    %v826 = vld [vmem:[%s2 + $0xb0] sm:$0xff]
    %v827 = vld [vmem:[%s2 + $0xb8] sm:$0xff]
    %v828 = vld [vmem:[%s2 + $0xc0] sm:$0xff]
    %v829 = vld [vmem:[%s2 + $0xc8] sm:$0xff]
    %v830 = vld [vmem:[%s2 + $0xd0] sm:$0xff]
    %v831 = vld [vmem:[%s2 + $0xd8] sm:$0xff]
    %v832 = vld [vmem:[%s3] sm:$0x1]
    %v834 = vlaneseq
    %v835 = vshrl.u32 %v834, 7
    %v836 = vsub.s32 0, %v835
    %v837 = vrot.slane %v832, %v836
    %v838 = vcombine.low %v663, %v677
    %v839 = vcombine.low %v685, %v687
    %v840 = vcombine.low %v670, %v684
    %v841 = vcombine.low %v686, %v688
    %v843 = vunpack.c.l.s4 1966171168
    %v844 = vunpack.c.0.s8 %v843
    %v845 = vlaneseq
    %v846 = vshrl.u32 %v845, 7
    %v847 = vsub.s32 %v844, %v846
    %v848 = vrot.slane %v838, %v847
    %v850 = vunpack.c.l.s4 1966171168
    %v851 = vunpack.c.0.s8 %v850
    %v852 = vlaneseq
    %v853 = vshrl.u32 %v852, 7
    %v854 = vsub.s32 %v851, %v853
    %v855 = vrot.slane %v839, %v854
    %v857 = vunpack.c.l.s4 1966171168
    %v858 = vunpack.c.0.s8 %v857
    %v859 = vlaneseq
    %v860 = vshrl.u32 %v859, 7
    %v861 = vsub.s32 %v858, %v860
    %v862 = vrot.slane %v840, %v861
    %v864 = vunpack.c.l.s4 1966171168
    %v865 = vunpack.c.0.s8 %v864
    %v866 = vlaneseq
    %v867 = vshrl.u32 %v866, 7
    %v868 = vsub.s32 %v865, %v867
    %v869 = vrot.slane %v841, %v868
    %v870 = vcombine.low %v848, %v855
    %v871 = vcombine.low %v862, %v869
    %v873 = vunpack.c.l.s4 1966171168
    %v874 = vunpack.c.0.s8 %v873
    %v875 = vlaneseq
    %v876 = vshrl.u32 %v875, 7
    %v877 = vsub.s32 %v874, %v876
    %v878 = vrot.slane %v870, %v877
    %v880 = vunpack.c.l.s4 1966171168
    %v881 = vunpack.c.0.s8 %v880
    %v882 = vlaneseq
    %v883 = vshrl.u32 %v882, 7
    %v884 = vsub.s32 %v881, %v883
    %v885 = vrot.slane %v871, %v884
    %v886 = vcombine.low %v878, %v885
    %v887 = vcombine.low %v711, %v725
    %v888 = vcombine.low %v726, %v727
    %v889 = vcombine.low %v718, %v751
    %v890 = vcombine.low %v765, %v773
    %v892 = vunpack.c.l.s4 1966171168
    %v893 = vunpack.c.0.s8 %v892
    %v894 = vlaneseq
    %v895 = vshrl.u32 %v894, 7
    %v896 = vsub.s32 %v893, %v895
    %v897 = vrot.slane %v887, %v896
    %v899 = vunpack.c.l.s4 1966171168
    %v900 = vunpack.c.0.s8 %v899
    %v901 = vlaneseq
    %v902 = vshrl.u32 %v901, 7
    %v903 = vsub.s32 %v900, %v902
    %v904 = vrot.slane %v888, %v903
    %v906 = vunpack.c.l.s4 1966171168
    %v907 = vunpack.c.0.s8 %v906
    %v908 = vlaneseq
    %v909 = vshrl.u32 %v908, 7
    %v910 = vsub.s32 %v907, %v909
    %v911 = vrot.slane %v889, %v910
    %v913 = vunpack.c.l.s4 1966171168
    %v914 = vunpack.c.0.s8 %v913
    %v915 = vlaneseq
    %v916 = vshrl.u32 %v915, 7
    %v917 = vsub.s32 %v914, %v916
    %v918 = vrot.slane %v890, %v917
    %v919 = vcombine.low %v897, %v904
    %v920 = vcombine.low %v911, %v918
    %v922 = vunpack.c.l.s4 1966171168
    %v923 = vunpack.c.0.s8 %v922
    %v924 = vlaneseq
    %v925 = vshrl.u32 %v924, 7
    %v926 = vsub.s32 %v923, %v925
    %v927 = vrot.slane %v919, %v926
    %v929 = vunpack.c.l.s4 1966171168
    %v930 = vunpack.c.0.s8 %v929
    %v931 = vlaneseq
    %v932 = vshrl.u32 %v931, 7
    %v933 = vsub.s32 %v930, %v932
    %v934 = vrot.slane %v920, %v933
    %v935 = vcombine.low %v927, %v934
    %v936 = vcombine.low %v775, %v758
    %v937 = vcombine.low %v772, %v774
    %v938 = vcombine.low %v776, %v799
    %v939 = vcombine.low %v813, %v814
    %v941 = vunpack.c.l.s4 1966171168
    %v942 = vunpack.c.0.s8 %v941
    %v943 = vlaneseq
    %v944 = vshrl.u32 %v943, 7
    %v945 = vsub.s32 %v942, %v944
    %v946 = vrot.slane %v936, %v945
    %v948 = vunpack.c.l.s4 1966171168
    %v949 = vunpack.c.0.s8 %v948
    %v950 = vlaneseq
    %v951 = vshrl.u32 %v950, 7
    %v952 = vsub.s32 %v949, %v951
    %v953 = vrot.slane %v937, %v952
    %v955 = vunpack.c.l.s4 1966171168
    %v956 = vunpack.c.0.s8 %v955
    %v957 = vlaneseq
    %v958 = vshrl.u32 %v957, 7
    %v959 = vsub.s32 %v956, %v958
    %v960 = vrot.slane %v938, %v959
    %v962 = vunpack.c.l.s4 1966171168
    %v963 = vunpack.c.0.s8 %v962
    %v964 = vlaneseq
    %v965 = vshrl.u32 %v964, 7
    %v966 = vsub.s32 %v963, %v965
    %v967 = vrot.slane %v939, %v966
    %v968 = vcombine.low %v946, %v953
    %v969 = vcombine.low %v960, %v967
    %v971 = vunpack.c.l.s4 1966171168
    %v972 = vunpack.c.0.s8 %v971
    %v973 = vlaneseq
    %v974 = vshrl.u32 %v973, 7
    %v975 = vsub.s32 %v972, %v974
    %v976 = vrot.slane %v968, %v975
    %v978 = vunpack.c.l.s4 1966171168
    %v979 = vunpack.c.0.s8 %v978
    %v980 = vlaneseq
    %v981 = vshrl.u32 %v980, 7
    %v982 = vsub.s32 %v979, %v981
    %v983 = vrot.slane %v969, %v982
    %v984 = vcombine.low %v976, %v983
    %v985 = vcombine.low %v815, %v806
    %v987 = vunpack.c.l.s4 1966171168
    %v988 = vunpack.c.0.s8 %v987
    %v989 = vlaneseq
    %v990 = vshrl.u32 %v989, 7
    %v991 = vsub.s32 %v988, %v990
    %v992 = vrot.slane %v985, %v991
    %v994 = vunpack.c.l.s4 1966171168
    %v995 = vunpack.c.0.s8 %v994
    %v996 = vlaneseq
    %v997 = vshrl.u32 %v996, 7
    %v998 = vsub.s32 %v995, %v997
    %v999 = vrot.slane %v992, %v998
    %1004 = vrot.lane.b32.xlu0 %v837, 112
    %v1005 = vpop.permute.xlu0 %1004
    %1007 = vmatprep.subr.mxu0 0.0
    %1008 = vmatpush1.msra.mxu0 %v831
    %1009 = vmatprep.subr.mxu0 0.0
    %1010 = vmatpush1.msra.mxu0 %v830
    %1011 = vmatprep.subr.mxu0 0.0
    %1012 = vmatpush1.msra.mxu0 %v829
    %1013 = vmatprep.subr.mxu0 0.0
    %1014 = vmatpush1.msra.mxu0 %v828
    %1015 = vmatprep.subr.mxu0 0.0
    %1016 = vmatpush1.msra.mxu0 %v827
    %1017 = vmatprep.subr.mxu0 0.0
    %1018 = vmatpush1.msra.mxu0 %v826
    %1019 = vmatprep.subr.mxu0 0.0
    %1020 = vmatpush1.msra.mxu0 %v825
    %1021 = vmatprep.subr.mxu0 0.0
    %1022 = vmatpush1.msra.mxu0 %v824
    %1023 = vmatprep.subr.mxu0 0.0
    %1024 = vmatpush1.msra.mxu0 %v823
    %1025 = vmatprep.subr.mxu0 0.0
    %1026 = vmatpush1.msra.mxu0 %v822
    %1027 = vmatprep.subr.mxu0 0.0
    %1028 = vmatpush1.msra.mxu0 %v821
    %1029 = vmatprep.subr.mxu0 0.0
    %1030 = vmatpush1.msra.mxu0 %v820
    %1031 = vmatprep.subr.mxu0 0.0
    %1032 = vmatpush1.msra.mxu0 %v819
    %1033 = vmatprep.subr.mxu0 0.0
    %1034 = vmatpush1.msra.mxu0 %v818
    %1035 = vmatprep.subr.mxu0 0.0
    %1036 = vmatpush1.msra.mxu0 %v817
    %1037 = vmatprep.subr.mxu0 0.0
    %1038 = vmatpush1.msra.mxu0 %v816
    %1039 = vmatprep.subr.mxu0 0.0
    %1040 = vmatpush2.msra.mxu0 0.0
    %1041 = vmatprep.subr.mxu0 0.0
    %1042 = vmatpush2.msra.mxu0 0.0
    %1043 = vmatprep.subr.mxu0 0.0
    %1044 = vmatpush2.msra.mxu0 0.0
    %1045 = vmatprep.subr.mxu0 0.0
    %1046 = vmatpush2.msra.mxu0 0.0
    %1047 = vmatprep.subr.mxu0 0.0
    %1048 = vmatpush2.msra.mxu0 0.0
    %1049 = vmatprep.subr.mxu0 0.0
    %1050 = vmatpush2.msra.mxu0 0.0
    %1051 = vmatprep.subr.mxu0 0.0
    %1052 = vmatpush2.msra.mxu0 0.0
    %1053 = vmatprep.subr.mxu0 0.0
    %1054 = vmatpush2.msra.mxu0 0.0
    %1055 = vmatprep.subr.mxu0 0.0
    %1056 = vmatpush2.msra.mxu0 0.0
    %1057 = vmatprep.subr.mxu0 0.0
    %1058 = vmatpush2.msra.mxu0 0.0
    %1059 = vmatprep.subr.mxu0 0.0
    %1060 = vmatpush2.msra.mxu0 0.0
    %1061 = vmatprep.subr.mxu0 0.0
    %1062 = vmatpush2.msra.mxu0 0.0
    %1063 = vmatprep.subr.mxu0 0.0
    %1064 = vmatpush2.msra.mxu0 0.0
    %1065 = vmatprep.subr.mxu0 0.0
    %1066 = vmatpush2.msra.mxu0 0.0
    %1067 = vmatprep.subr.mxu0 0.0
    %1068 = vmatpush2.msra.mxu0 0.0
    %1069 = vmatprep.subr.mxu0 0.0
    %1070 = vmatpush2.msra.mxu0 0.0
    %1071 = vmatprep.mubr.f32.mxu0 0.0
    %1072 = vmatmul.mubr.f32.gmra.mxu0 %v886
    %v1073 = vpop.f32.mrf.mxu0
    %v1074 = vadd.f32 %v1005, %v1073
    %v1075 = vpop.f32.mrf.mxu0
    %1076 = vmatprep.mubr.f32.mxu0 0.0
    %1077 = vmatmul.mubr.f32.gmra.mxu0 %v935
    %v1078 = vpop.f32.mrf.mxu0
    %v1079 = vadd.f32 %v1005, %v1078
    %v1080 = vpop.f32.mrf.mxu0
    %1081 = vmatprep.mubr.f32.mxu0 0.0
    %1082 = vmatmul.mubr.f32.gmra.mxu0 %v984
    %v1083 = vpop.f32.mrf.mxu0
    %v1084 = vadd.f32 %v1005, %v1083
    %v1085 = vpop.f32.mrf.mxu0
    %1086 = vmatprep.mubr.f32.mxu0 0.0
    %1087 = vmatmul.mubr.f32.gmra.mxu0 %v999
    %v1088 = vpop.f32.mrf.mxu0
    %v1089 = vadd.f32 %v1005, %v1088
    %v1090 = vpop.f32.mrf.mxu0
    %1091 = vdwg.mxu0
    %v1092 = vmax.f32 %v1074, 0.0
    %v1093 = vmax.f32 %v1079, 0.0
    %v1094 = vmax.f32 %v1084, 0.0
    %v1095 = vmax.f32 %v1089, 0.0
    %v1100 = vcombine.high %v1092, %v1092
    %v1102 = vunpack.c.l.s4 1966171168
    %v1103 = vunpack.c.0.s8 %v1102
    %v1104 = vlaneseq
    %v1105 = vshrl.u32 %v1104, 7
    %v1106 = vsub.s32 %v1103, %v1105
    %v1107 = vrot.slane %v1092, %v1106
    %v1109 = vunpack.c.l.s4 1966171168
    %v1110 = vunpack.c.0.s8 %v1109
    %v1111 = vlaneseq
    %v1112 = vshrl.u32 %v1111, 7
    %v1113 = vsub.s32 %v1110, %v1112
    %v1114 = vrot.slane %v1100, %v1113
    %v1115 = vcombine.high %v1107, %v1107
    %v1116 = vcombine.high %v1114, %v1114
    %v1118 = vunpack.c.l.s4 1966171168
    %v1119 = vunpack.c.0.s8 %v1118
    %v1120 = vlaneseq
    %v1121 = vshrl.u32 %v1120, 7
    %v1122 = vsub.s32 %v1119, %v1121
    %v1123 = vrot.slane %v1107, %v1122
    %v1125 = vunpack.c.l.s4 1966171168
    %v1126 = vunpack.c.0.s8 %v1125
    %v1127 = vlaneseq
    %v1128 = vshrl.u32 %v1127, 7
    %v1129 = vsub.s32 %v1126, %v1128
    %v1130 = vrot.slane %v1114, %v1129
    %v1132 = vunpack.c.l.s4 1966171168
    %v1133 = vunpack.c.0.s8 %v1132
    %v1134 = vlaneseq
    %v1135 = vshrl.u32 %v1134, 7
    %v1136 = vsub.s32 %v1133, %v1135
    %v1137 = vrot.slane %v1115, %v1136
    %v1139 = vunpack.c.l.s4 1966171168
    %v1140 = vunpack.c.0.s8 %v1139
    %v1141 = vlaneseq
    %v1142 = vshrl.u32 %v1141, 7
    %v1143 = vsub.s32 %v1140, %v1142
    %v1144 = vrot.slane %v1116, %v1143
    %v1145 = vcombine.high %v1123, %v1123
    %v1146 = vcombine.high %v1130, %v1130
    %v1147 = vcombine.high %v1137, %v1137
    %v1148 = vcombine.high %v1144, %v1144
    %v1149 = vcombine.high %v1093, %v1093
    %v1151 = vunpack.c.l.s4 1966171168
    %v1152 = vunpack.c.0.s8 %v1151
    %v1153 = vlaneseq
    %v1154 = vshrl.u32 %v1153, 7
    %v1155 = vsub.s32 %v1152, %v1154
    %v1156 = vrot.slane %v1093, %v1155
    %v1158 = vunpack.c.l.s4 1966171168
    %v1159 = vunpack.c.0.s8 %v1158
    %v1160 = vlaneseq
    %v1161 = vshrl.u32 %v1160, 7
    %v1162 = vsub.s32 %v1159, %v1161
    %v1163 = vrot.slane %v1149, %v1162
    %v1164 = vcombine.high %v1156, %v1156
    %v1165 = vcombine.high %v1163, %v1163
    %v1167 = vunpack.c.l.s4 1966171168
    %v1168 = vunpack.c.0.s8 %v1167
    %v1169 = vlaneseq
    %v1170 = vshrl.u32 %v1169, 7
    %v1171 = vsub.s32 %v1168, %v1170
    %v1172 = vrot.slane %v1156, %v1171
    %v1174 = vunpack.c.l.s4 1966171168
    %v1175 = vunpack.c.0.s8 %v1174
    %v1176 = vlaneseq
    %v1177 = vshrl.u32 %v1176, 7
    %v1178 = vsub.s32 %v1175, %v1177
    %v1179 = vrot.slane %v1163, %v1178
    %v1181 = vunpack.c.l.s4 1966171168
    %v1182 = vunpack.c.0.s8 %v1181
    %v1183 = vlaneseq
    %v1184 = vshrl.u32 %v1183, 7
    %v1185 = vsub.s32 %v1182, %v1184
    %v1186 = vrot.slane %v1164, %v1185
    %v1188 = vunpack.c.l.s4 1966171168
    %v1189 = vunpack.c.0.s8 %v1188
    %v1190 = vlaneseq
    %v1191 = vshrl.u32 %v1190, 7
    %v1192 = vsub.s32 %v1189, %v1191
    %v1193 = vrot.slane %v1165, %v1192
    %v1194 = vcombine.high %v1172, %v1172
    %v1195 = vcombine.high %v1179, %v1179
    %v1196 = vcombine.high %v1186, %v1186
    %v1197 = vcombine.high %v1193, %v1193
    %v1198 = vcombine.high %v1094, %v1094
    %v1200 = vunpack.c.l.s4 1966171168
    %v1201 = vunpack.c.0.s8 %v1200
    %v1202 = vlaneseq
    %v1203 = vshrl.u32 %v1202, 7
    %v1204 = vsub.s32 %v1201, %v1203
    %v1205 = vrot.slane %v1094, %v1204
    %v1207 = vunpack.c.l.s4 1966171168
    %v1208 = vunpack.c.0.s8 %v1207
    %v1209 = vlaneseq
    %v1210 = vshrl.u32 %v1209, 7
    %v1211 = vsub.s32 %v1208, %v1210
    %v1212 = vrot.slane %v1198, %v1211
    %v1213 = vcombine.high %v1205, %v1205
    %v1214 = vcombine.high %v1212, %v1212
    %v1216 = vunpack.c.l.s4 1966171168
    %v1217 = vunpack.c.0.s8 %v1216
    %v1218 = vlaneseq
    %v1219 = vshrl.u32 %v1218, 7
    %v1220 = vsub.s32 %v1217, %v1219
    %v1221 = vrot.slane %v1205, %v1220
    %v1223 = vunpack.c.l.s4 1966171168
    %v1224 = vunpack.c.0.s8 %v1223
    %v1225 = vlaneseq
    %v1226 = vshrl.u32 %v1225, 7
    %v1227 = vsub.s32 %v1224, %v1226
    %v1228 = vrot.slane %v1212, %v1227
    %v1230 = vunpack.c.l.s4 1966171168
    %v1231 = vunpack.c.0.s8 %v1230
    %v1232 = vlaneseq
    %v1233 = vshrl.u32 %v1232, 7
    %v1234 = vsub.s32 %v1231, %v1233
    %v1235 = vrot.slane %v1213, %v1234
    %v1237 = vunpack.c.l.s4 1966171168
    %v1238 = vunpack.c.0.s8 %v1237
    %v1239 = vlaneseq
    %v1240 = vshrl.u32 %v1239, 7
    %v1241 = vsub.s32 %v1238, %v1240
    %v1242 = vrot.slane %v1214, %v1241
    %v1243 = vcombine.high %v1221, %v1221
    %v1244 = vcombine.high %v1228, %v1228
    %v1245 = vcombine.high %v1235, %v1235
    %v1246 = vcombine.high %v1242, %v1242
    %v1248 = vunpack.c.l.s4 1966171168
    %v1249 = vunpack.c.0.s8 %v1248
    %v1250 = vlaneseq
    %v1251 = vshrl.u32 %v1250, 7
    %v1252 = vsub.s32 %v1249, %v1251
    %v1253 = vrot.slane %v1095, %v1252
    %v1254 = vcombine.high %v1253, %v1253
    %v1256 = vunpack.c.l.s4 1966171168
    %v1257 = vunpack.c.0.s8 %v1256
    %v1258 = vlaneseq
    %v1259 = vshrl.u32 %v1258, 7
    %v1260 = vsub.s32 %v1257, %v1259
    %v1261 = vrot.slane %v1253, %v1260
    %v1263 = vunpack.c.l.s4 1966171168
    %v1264 = vunpack.c.0.s8 %v1263
    %v1265 = vlaneseq
    %v1266 = vshrl.u32 %v1265, 7
    %v1267 = vsub.s32 %v1264, %v1266
    %v1268 = vrot.slane %v1254, %v1267
    %v1269 = vcombine.low %v1123, %v1137
    %v1270 = vcombine.low %v1145, %v1147
    %v1271 = vcombine.low %v1130, %v1144
    %v1272 = vcombine.low %v1146, %v1148
    %v1274 = vunpack.c.l.s4 1966171168
    %v1275 = vunpack.c.0.s8 %v1274
    %v1276 = vlaneseq
    %v1277 = vshrl.u32 %v1276, 7
    %v1278 = vsub.s32 %v1275, %v1277
    %v1279 = vrot.slane %v1269, %v1278
    %v1281 = vunpack.c.l.s4 1966171168
    %v1282 = vunpack.c.0.s8 %v1281
    %v1283 = vlaneseq
    %v1284 = vshrl.u32 %v1283, 7
    %v1285 = vsub.s32 %v1282, %v1284
    %v1286 = vrot.slane %v1270, %v1285
    %v1288 = vunpack.c.l.s4 1966171168
    %v1289 = vunpack.c.0.s8 %v1288
    %v1290 = vlaneseq
    %v1291 = vshrl.u32 %v1290, 7
    %v1292 = vsub.s32 %v1289, %v1291
    %v1293 = vrot.slane %v1271, %v1292
    %v1295 = vunpack.c.l.s4 1966171168
    %v1296 = vunpack.c.0.s8 %v1295
    %v1297 = vlaneseq
    %v1298 = vshrl.u32 %v1297, 7
    %v1299 = vsub.s32 %v1296, %v1298
    %v1300 = vrot.slane %v1272, %v1299
    %v1301 = vcombine.low %v1279, %v1286
    %v1302 = vcombine.low %v1293, %v1300
    %v1304 = vunpack.c.l.s4 1966171168
    %v1305 = vunpack.c.0.s8 %v1304
    %v1306 = vlaneseq
    %v1307 = vshrl.u32 %v1306, 7
    %v1308 = vsub.s32 %v1305, %v1307
    %v1309 = vrot.slane %v1301, %v1308
    %v1311 = vunpack.c.l.s4 1966171168
    %v1312 = vunpack.c.0.s8 %v1311
    %v1313 = vlaneseq
    %v1314 = vshrl.u32 %v1313, 7
    %v1315 = vsub.s32 %v1312, %v1314
    %v1316 = vrot.slane %v1302, %v1315
    %v1317 = vcombine.low %v1309, %v1316
    %v1318 = vcombine.low %v1172, %v1186
    %v1319 = vcombine.low %v1194, %v1196
    %v1321 = vunpack.c.l.s4 1966171168
    %v1322 = vunpack.c.0.s8 %v1321
    %v1323 = vlaneseq
    %v1324 = vshrl.u32 %v1323, 7
    %v1325 = vsub.s32 %v1322, %v1324
    %v1326 = vrot.slane %v1318, %v1325
    %v1328 = vunpack.c.l.s4 1966171168
    %v1329 = vunpack.c.0.s8 %v1328
    %v1330 = vlaneseq
    %v1331 = vshrl.u32 %v1330, 7
    %v1332 = vsub.s32 %v1329, %v1331
    %v1333 = vrot.slane %v1319, %v1332
    %v1335 = vunpack.c.l.s4 1966171168
    %v1336 = vunpack.c.0.s8 %v1335
    %v1337 = vlaneseq
    %v1338 = vshrl.u32 %v1337, 7
    %v1339 = vsub.s32 %v1336, %v1338
    %v1340 = vrot.slane %v1179, %v1339
    %v1341 = vcombine.low %v1326, %v1333
    %v1343 = vunpack.c.l.s4 1966171168
    %v1344 = vunpack.c.0.s8 %v1343
    %v1345 = vlaneseq
    %v1346 = vshrl.u32 %v1345, 7
    %v1347 = vsub.s32 %v1344, %v1346
    %v1348 = vrot.slane %v1341, %v1347
    %v1350 = vunpack.c.l.s4 1966171168
    %v1351 = vunpack.c.0.s8 %v1350
    %v1352 = vlaneseq
    %v1353 = vshrl.u32 %v1352, 7
    %v1354 = vsub.s32 %v1351, %v1353
    %v1355 = vrot.slane %v1340, %v1354
    %v1356 = vcombine.low %v1348, %v1355
    %v1357 = vcombine.low %v1193, %v1195
    %v1358 = vcombine.low %v1197, %v1221
    %v1359 = vcombine.low %v1235, %v1243
    %v1360 = vcombine.low %v1245, %v1228
    %v1362 = vunpack.c.l.s4 1966171168
    %v1363 = vunpack.c.0.s8 %v1362
    %v1364 = vlaneseq
    %v1365 = vshrl.u32 %v1364, 7
    %v1366 = vsub.s32 %v1363, %v1365
    %v1367 = vrot.slane %v1357, %v1366
    %v1369 = vunpack.c.l.s4 1966171168
    %v1370 = vunpack.c.0.s8 %v1369
    %v1371 = vlaneseq
    %v1372 = vshrl.u32 %v1371, 7
    %v1373 = vsub.s32 %v1370, %v1372
    %v1374 = vrot.slane %v1358, %v1373
    %v1376 = vunpack.c.l.s4 1966171168
    %v1377 = vunpack.c.0.s8 %v1376
    %v1378 = vlaneseq
    %v1379 = vshrl.u32 %v1378, 7
    %v1380 = vsub.s32 %v1377, %v1379
    %v1381 = vrot.slane %v1359, %v1380
    %v1383 = vunpack.c.l.s4 1966171168
    %v1384 = vunpack.c.0.s8 %v1383
    %v1385 = vlaneseq
    %v1386 = vshrl.u32 %v1385, 7
    %v1387 = vsub.s32 %v1384, %v1386
    %v1388 = vrot.slane %v1360, %v1387
    %v1389 = vcombine.low %v1367, %v1374
    %v1390 = vcombine.low %v1381, %v1388
    %v1392 = vunpack.c.l.s4 1966171168
    %v1393 = vunpack.c.0.s8 %v1392
    %v1394 = vlaneseq
    %v1395 = vshrl.u32 %v1394, 7
    %v1396 = vsub.s32 %v1393, %v1395
    %v1397 = vrot.slane %v1389, %v1396
    %v1399 = vunpack.c.l.s4 1966171168
    %v1400 = vunpack.c.0.s8 %v1399
    %v1401 = vlaneseq
    %v1402 = vshrl.u32 %v1401, 7
    %v1403 = vsub.s32 %v1400, %v1402
    %v1404 = vrot.slane %v1390, %v1403
    %v1405 = vcombine.low %v1397, %v1404
    %v1406 = vcombine.low %v1242, %v1244
    %v1407 = vcombine.low %v1246, %v1261
    %v1409 = vunpack.c.l.s4 1966171168
    %v1410 = vunpack.c.0.s8 %v1409
    %v1411 = vlaneseq
    %v1412 = vshrl.u32 %v1411, 7
    %v1413 = vsub.s32 %v1410, %v1412
    %v1414 = vrot.slane %v1406, %v1413
    %v1416 = vunpack.c.l.s4 1966171168
    %v1417 = vunpack.c.0.s8 %v1416
    %v1418 = vlaneseq
    %v1419 = vshrl.u32 %v1418, 7
    %v1420 = vsub.s32 %v1417, %v1419
    %v1421 = vrot.slane %v1407, %v1420
    %v1423 = vunpack.c.l.s4 1966171168
    %v1424 = vunpack.c.0.s8 %v1423
    %v1425 = vlaneseq
    %v1426 = vshrl.u32 %v1425, 7
    %v1427 = vsub.s32 %v1424, %v1426
    %v1428 = vrot.slane %v1268, %v1427
    %v1429 = vcombine.low %v1414, %v1421
    %v1431 = vunpack.c.l.s4 1966171168
    %v1432 = vunpack.c.0.s8 %v1431
    %v1433 = vlaneseq
    %v1434 = vshrl.u32 %v1433, 7
    %v1435 = vsub.s32 %v1432, %v1434
    %v1436 = vrot.slane %v1429, %v1435
    %v1438 = vunpack.c.l.s4 1966171168
    %v1439 = vunpack.c.0.s8 %v1438
    %v1440 = vlaneseq
    %v1441 = vshrl.u32 %v1440, 7
    %v1442 = vsub.s32 %v1439, %v1441
    %v1443 = vrot.slane %v1428, %v1442
    %v1444 = vcombine.low %v1436, %v1443
    %v1449 = vsel %vm591, %v1317, -inf
    %vm1450 = vcmask 126976
    %v1451 = vsel %vm1450, %v1356, -inf
    %v1452 = vmax.f32 %v1449, %v1451
    %v1453 = vrot.slane %v1452, 4
    %v1454 = vmax.f32 %v1452, %v1453
    %v1455 = vrot.slane %v1454, 2
    %v1456 = vmax.f32 %v1454, %v1455
    %v1457 = vrot.slane %v1456, 1
    %v1458 = vmax.f32 %v1456, %v1457
    %v1459 = vsel %vm591, %v1405, -inf
    %v1460 = vsel %vm1450, %v1444, -inf
    %v1461 = vmax.f32 %v1459, %v1460
    %v1462 = vrot.slane %v1461, 4
    %v1463 = vmax.f32 %v1461, %v1462
    %v1464 = vrot.slane %v1463, 2
    %v1465 = vmax.f32 %v1463, %v1464
    %v1466 = vrot.slane %v1465, 1
    %v1467 = vmax.f32 %v1465, %v1466
    %v1468 = vld [vmem:[%s4 + $0x10] sm:$0xff]
    %v1469 = vld [vmem:[%s4 + $0x18] sm:$0xff]
    %vm1472 = vcmask 1041409
    %v1473 = vsel %vm1472, %v1467, %v1458
    %v1474 = vsel %vm591, %v1473, 0
    %1476 = vmatprep.subr.mxu0 0.0
    %1477 = vmatpush1.msra.mxu0 0.0
    %1478 = vmatprep.subr.mxu0 0.0
    %1479 = vmatpush1.msra.mxu0 0.0
    %1480 = vmatprep.subr.mxu0 0.0
    %1481 = vmatpush1.msra.mxu0 0.0
    %1482 = vmatprep.subr.mxu0 0.0
    %1483 = vmatpush1.msra.mxu0 0.0
    %1484 = vmatprep.subr.mxu0 0.0
    %1485 = vmatpush1.msra.mxu0 0.0
    %1486 = vmatprep.subr.mxu0 0.0
    %1487 = vmatpush1.msra.mxu0 0.0
    %1488 = vmatprep.subr.mxu0 0.0
    %1489 = vmatpush1.msra.mxu0 0.0
    %1490 = vmatprep.subr.mxu0 0.0
    %1491 = vmatpush1.msra.mxu0 0.0
    %1492 = vmatprep.subr.mxu0 0.0
    %1493 = vmatpush1.msra.mxu0 0.0
    %1494 = vmatprep.subr.mxu0 0.0
    %1495 = vmatpush1.msra.mxu0 0.0
    %1496 = vmatprep.subr.mxu0 0.0
    %1497 = vmatpush1.msra.mxu0 0.0
    %1498 = vmatprep.subr.mxu0 0.0
    %1499 = vmatpush1.msra.mxu0 0.0
    %1500 = vmatprep.subr.mxu0 0.0
    %1501 = vmatpush1.msra.mxu0 0.0
    %1502 = vmatprep.subr.mxu0 0.0
    %1503 = vmatpush1.msra.mxu0 0.0
    %1504 = vmatprep.subr.mxu0 0.0
    %1505 = vmatpush1.msra.mxu0 %v1469
    %1506 = vmatprep.subr.mxu0 0.0
    %1507 = vmatpush1.msra.mxu0 %v1468
    %1508 = vmatprep.subr.mxu0 0.0
    %1509 = vmatpush2.msra.mxu0 0.0
    %1510 = vmatprep.subr.mxu0 0.0
    %1511 = vmatpush2.msra.mxu0 0.0
    %1512 = vmatprep.subr.mxu0 0.0
    %1513 = vmatpush2.msra.mxu0 0.0
    %1514 = vmatprep.subr.mxu0 0.0
    %1515 = vmatpush2.msra.mxu0 0.0
    %1516 = vmatprep.subr.mxu0 0.0
    %1517 = vmatpush2.msra.mxu0 0.0
    %1518 = vmatprep.subr.mxu0 0.0
    %1519 = vmatpush2.msra.mxu0 0.0
    %1520 = vmatprep.subr.mxu0 0.0
    %1521 = vmatpush2.msra.mxu0 0.0
    %1522 = vmatprep.subr.mxu0 0.0
    %1523 = vmatpush2.msra.mxu0 0.0
    %1524 = vmatprep.subr.mxu0 0.0
    %1525 = vmatpush2.msra.mxu0 0.0
    %1526 = vmatprep.subr.mxu0 0.0
    %1527 = vmatpush2.msra.mxu0 0.0
    %1528 = vmatprep.subr.mxu0 0.0
    %1529 = vmatpush2.msra.mxu0 0.0
    %1530 = vmatprep.subr.mxu0 0.0
    %1531 = vmatpush2.msra.mxu0 0.0
    %1532 = vmatprep.subr.mxu0 0.0
    %1533 = vmatpush2.msra.mxu0 0.0
    %1534 = vmatprep.subr.mxu0 0.0
    %1535 = vmatpush2.msra.mxu0 0.0
    %1536 = vmatprep.subr.mxu0 0.0
    %1537 = vmatpush2.msra.mxu0 0.0
    %1538 = vmatprep.subr.mxu0 0.0
    %1539 = vmatpush2.msra.mxu0 0.0
    %1540 = vmatprep.mubr.f32.mxu0 0.0
    %1541 = vmatmul.mubr.f32.gmra.mxu0 %v1474
    %v1542 = vpop.f32.mrf.mxu0
    %v1543 = vadd.f32 0.0, %v1542
    %v1544 = vpop.f32.mrf.mxu0
    %1545 = vdwg.mxu0
    %v1548 = vsel %vm1472, %v610, %v601
    %v1549 = vsel %vm591, %v1548, 0
    %1551 = vmatprep.subr.mxu0 0.0
    %1552 = vmatpush1.msra.mxu0 0.0
    %1553 = vmatprep.subr.mxu0 0.0
    %1554 = vmatpush1.msra.mxu0 0.0
    %1555 = vmatprep.subr.mxu0 0.0
    %1556 = vmatpush1.msra.mxu0 0.0
    %1557 = vmatprep.subr.mxu0 0.0
    %1558 = vmatpush1.msra.mxu0 0.0
    %1559 = vmatprep.subr.mxu0 0.0
    %1560 = vmatpush1.msra.mxu0 0.0
    %1561 = vmatprep.subr.mxu0 0.0
    %1562 = vmatpush1.msra.mxu0 0.0
    %1563 = vmatprep.subr.mxu0 0.0
    %1564 = vmatpush1.msra.mxu0 0.0
    %1565 = vmatprep.subr.mxu0 0.0
    %1566 = vmatpush1.msra.mxu0 0.0
    %1567 = vmatprep.subr.mxu0 0.0
    %1568 = vmatpush1.msra.mxu0 0.0
    %1569 = vmatprep.subr.mxu0 0.0
    %1570 = vmatpush1.msra.mxu0 0.0
    %1571 = vmatprep.subr.mxu0 0.0
    %1572 = vmatpush1.msra.mxu0 0.0
    %1573 = vmatprep.subr.mxu0 0.0
    %1574 = vmatpush1.msra.mxu0 0.0
    %1575 = vmatprep.subr.mxu0 0.0
    %1576 = vmatpush1.msra.mxu0 0.0
    %1577 = vmatprep.subr.mxu0 0.0
    %1578 = vmatpush1.msra.mxu0 0.0
    %1579 = vmatprep.subr.mxu0 0.0
    %1580 = vmatpush1.msra.mxu0 %v612
    %1581 = vmatprep.subr.mxu0 0.0
    %1582 = vmatpush1.msra.mxu0 %v611
    %1583 = vmatprep.subr.mxu0 0.0
    %1584 = vmatpush2.msra.mxu0 0.0
    %1585 = vmatprep.subr.mxu0 0.0
    %1586 = vmatpush2.msra.mxu0 0.0
    %1587 = vmatprep.subr.mxu0 0.0
    %1588 = vmatpush2.msra.mxu0 0.0
    %1589 = vmatprep.subr.mxu0 0.0
    %1590 = vmatpush2.msra.mxu0 0.0
    %1591 = vmatprep.subr.mxu0 0.0
    %1592 = vmatpush2.msra.mxu0 0.0
    %1593 = vmatprep.subr.mxu0 0.0
    %1594 = vmatpush2.msra.mxu0 0.0
    %1595 = vmatprep.subr.mxu0 0.0
    %1596 = vmatpush2.msra.mxu0 0.0
    %1597 = vmatprep.subr.mxu0 0.0
    %1598 = vmatpush2.msra.mxu0 0.0
    %1599 = vmatprep.subr.mxu0 0.0
    %1600 = vmatpush2.msra.mxu0 0.0
    %1601 = vmatprep.subr.mxu0 0.0
    %1602 = vmatpush2.msra.mxu0 0.0
    %1603 = vmatprep.subr.mxu0 0.0
    %1604 = vmatpush2.msra.mxu0 0.0
    %1605 = vmatprep.subr.mxu0 0.0
    %1606 = vmatpush2.msra.mxu0 0.0
    %1607 = vmatprep.subr.mxu0 0.0
    %1608 = vmatpush2.msra.mxu0 0.0
    %1609 = vmatprep.subr.mxu0 0.0
    %1610 = vmatpush2.msra.mxu0 0.0
    %1611 = vmatprep.subr.mxu0 0.0
    %1612 = vmatpush2.msra.mxu0 0.0
    %1613 = vmatprep.subr.mxu0 0.0
    %1614 = vmatpush2.msra.mxu0 0.0
    %1615 = vmatprep.mubr.f32.mxu0 0.0
    %1616 = vmatmul.mubr.f32.gmra.mxu0 %v1549
    %v1617 = vpop.f32.mrf.mxu0
    %v1618 = vadd.f32 %v1543, %v1617
    %v1619 = vpop.f32.mrf.mxu0
    %1620 = vdwg.mxu0
    %vm1621 = vcmask 1043456
    %v1622 = vrot.slane %v142, 4
    %v1623 = vrot.slane %v147, 4
    %v1624 = vsel %vm1621, %v1622, %v1623
    %v1625 = vrot.slane %v152, 4
    %v1626 = vrot.slane %v157, 4
    %v1627 = vsel %vm1621, %v1625, %v1626
    %v1628 = vcombine.low %v632, %v1624
    %v1629 = vcombine.high %v632, %v1624
    %v1630 = vcombine.low %v633, %v1623
    %v1631 = vcombine.low %v634, %v1627
    %v1632 = vcombine.high %v634, %v1627
    %v1633 = vcombine.low %v635, %v1626
    %v1634 = vld [vmem:[%s2 + $0xe0] sm:$0xff]
    %v1635 = vld [vmem:[%s2 + $0xe8] sm:$0xff]
    %v1636 = vld [vmem:[%s2 + $0xf0] sm:$0xff]
    %v1637 = vld [vmem:[%s2 + $0xf8] sm:$0xff]
    %v1638 = vld [vmem:[%s2 + $0x100] sm:$0xff]
    %v1639 = vld [vmem:[%s2 + $0x108] sm:$0xff]
    %v1640 = vld [vmem:[%s2 + $0x110] sm:$0xff]
    %v1641 = vld [vmem:[%s2 + $0x118] sm:$0xff]
    %v1642 = vld [vmem:[%s2 + $0x120] sm:$0xff]
    %v1643 = vld [vmem:[%s2 + $0x128] sm:$0xff]
    %v1644 = vld [vmem:[%s2 + $0x130] sm:$0xff]
    %v1645 = vld [vmem:[%s2 + $0x138] sm:$0xff]
    %v1646 = vld [vmem:[%s2 + $0x140] sm:$0xff]
    %v1647 = vld [vmem:[%s2 + $0x148] sm:$0xff]
    %v1648 = vld [vmem:[%s2 + $0x150] sm:$0xff]
    %v1649 = vld [vmem:[%s2 + $0x158] sm:$0xff]
    %v1650 = vld [vmem:[%s2 + $0x160] sm:$0xff]
    %v1651 = vld [vmem:[%s2 + $0x168] sm:$0xff]
    %v1652 = vld [vmem:[%s2 + $0x170] sm:$0xff]
    %v1653 = vld [vmem:[%s2 + $0x178] sm:$0xff]
    %v1654 = vld [vmem:[%s3] sm:$0x1]
    %v1656 = vlaneseq
    %v1657 = vshrl.u32 %v1656, 7
    %v1658 = vsub.s32 0, %v1657
    %v1659 = vrot.slane %v1654, %v1658
    %v1660 = vcombine.low %v1628, %v1629
    %v1661 = vcombine.high %v1628, %v1629
    %v1662 = vcombine.low %v1630, %v1631
    %v1663 = vcombine.high %v1630, %v1631
    %v1664 = vcombine.low %v1632, %v1633
    %v1665 = vcombine.high %v1632, %v1633
    %1669 = vrot.lane.b32.xlu0 %v1659, 96
    %v1670 = vpop.permute.xlu0 %1669
    %v1672 = vsel %vm202, %v1661, 0
    %v1674 = vsel %vm202, %v1663, 0
    %v1676 = vsel %vm202, %v1665, 0
    %1678 = vmatprep.subr.mxu0 0.0
    %1679 = vmatpush1.msra.mxu0 %v1649
    %1680 = vmatprep.subr.mxu0 0.0
    %1681 = vmatpush1.msra.mxu0 %v1648
    %1682 = vmatprep.subr.mxu0 0.0
    %1683 = vmatpush1.msra.mxu0 %v1647
    %1684 = vmatprep.subr.mxu0 0.0
    %1685 = vmatpush1.msra.mxu0 %v1646
    %1686 = vmatprep.subr.mxu0 0.0
    %1687 = vmatpush1.msra.mxu0 %v1645
    %1688 = vmatprep.subr.mxu0 0.0
    %1689 = vmatpush1.msra.mxu0 %v1644
    %1690 = vmatprep.subr.mxu0 0.0
    %1691 = vmatpush1.msra.mxu0 %v1643
    %1692 = vmatprep.subr.mxu0 0.0
    %1693 = vmatpush1.msra.mxu0 %v1642
    %1694 = vmatprep.subr.mxu0 0.0
    %1695 = vmatpush1.msra.mxu0 %v1641
    %1696 = vmatprep.subr.mxu0 0.0
    %1697 = vmatpush1.msra.mxu0 %v1640
    %1698 = vmatprep.subr.mxu0 0.0
    %1699 = vmatpush1.msra.mxu0 %v1639
    %1700 = vmatprep.subr.mxu0 0.0
    %1701 = vmatpush1.msra.mxu0 %v1638
    %1702 = vmatprep.subr.mxu0 0.0
    %1703 = vmatpush1.msra.mxu0 %v1637
    %1704 = vmatprep.subr.mxu0 0.0
    %1705 = vmatpush1.msra.mxu0 %v1636
    %1706 = vmatprep.subr.mxu0 0.0
    %1707 = vmatpush1.msra.mxu0 %v1635
    %1708 = vmatprep.subr.mxu0 0.0
    %1709 = vmatpush1.msra.mxu0 %v1634
    %1710 = vmatprep.subr.mxu0 0.0
    %1711 = vmatpush2.msra.mxu0 0.0
    %1712 = vmatprep.subr.mxu0 0.0
    %1713 = vmatpush2.msra.mxu0 0.0
    %1714 = vmatprep.subr.mxu0 0.0
    %1715 = vmatpush2.msra.mxu0 0.0
    %1716 = vmatprep.subr.mxu0 0.0
    %1717 = vmatpush2.msra.mxu0 0.0
    %1718 = vmatprep.subr.mxu0 0.0
    %1719 = vmatpush2.msra.mxu0 0.0
    %1720 = vmatprep.subr.mxu0 0.0
    %1721 = vmatpush2.msra.mxu0 0.0
    %1722 = vmatprep.subr.mxu0 0.0
    %1723 = vmatpush2.msra.mxu0 0.0
    %1724 = vmatprep.subr.mxu0 0.0
    %1725 = vmatpush2.msra.mxu0 0.0
    %1726 = vmatprep.subr.mxu0 0.0
    %1727 = vmatpush2.msra.mxu0 0.0
    %1728 = vmatprep.subr.mxu0 0.0
    %1729 = vmatpush2.msra.mxu0 0.0
    %1730 = vmatprep.subr.mxu0 0.0
    %1731 = vmatpush2.msra.mxu0 0.0
    %1732 = vmatprep.subr.mxu0 0.0
    %1733 = vmatpush2.msra.mxu0 0.0
    %1734 = vmatprep.subr.mxu0 0.0
    %1735 = vmatpush2.msra.mxu0 %v1653
    %1736 = vmatprep.subr.mxu0 0.0
    %1737 = vmatpush2.msra.mxu0 %v1652
    %1738 = vmatprep.subr.mxu0 0.0
    %1739 = vmatpush2.msra.mxu0 %v1651
    %1740 = vmatprep.subr.mxu0 0.0
    %1741 = vmatpush2.msra.mxu0 %v1650
    %1742 = vmatprep.mubr.f32.mxu0 %v1672
    %1743 = vmatmul.mubr.f32.gmra.mxu0 %v1660
    %v1744 = vpop.f32.mrf.mxu0
    %v1745 = vadd.f32 %v1670, %v1744
    %v1746 = vpop.f32.mrf.mxu0
    %1747 = vmatprep.mubr.f32.mxu0 %v1674
    %1748 = vmatmul.mubr.f32.gmra.mxu0 %v1662
    %v1749 = vpop.f32.mrf.mxu0
    %v1750 = vadd.f32 %v1670, %v1749
    %v1751 = vpop.f32.mrf.mxu0
    %1752 = vmatprep.mubr.f32.mxu0 %v1676
    %1753 = vmatmul.mubr.f32.gmra.mxu0 %v1664
    %v1754 = vpop.f32.mrf.mxu0
    %v1755 = vadd.f32 %v1670, %v1754
    %v1756 = vpop.f32.mrf.mxu0
    %1757 = vdwg.mxu0
    %v1758 = vmax.f32 %v1745, 0.0
    %v1759 = vmax.f32 %v1750, 0.0
    %v1760 = vmax.f32 %v1755, 0.0
    %v1764 = vcombine.high %v1758, %v1758
    %v1765 = vcombine.high %v1759, %v1759
    %v1766 = vcombine.high %v1760, %v1760
    %v1768 = vcombine.low %v1758, %v1764
    %v1769 = vcombine.low %v1765, %v1760
    %v1772 = vsel %vm591, %v1768, -inf
    %vm1773 = vcmask 125952
    %v1774 = vsel %vm1773, %v1759, -inf
    %v1775 = vmax.f32 %v1772, %v1774
    %v1776 = vrot.slane %v1775, 4
    %v1777 = vmax.f32 %v1775, %v1776
    %v1778 = vrot.slane %v1777, 2
    %v1779 = vmax.f32 %v1777, %v1778
    %v1780 = vrot.slane %v1779, 1
    %v1781 = vmax.f32 %v1779, %v1780
    %v1782 = vsel %vm591, %v1769, -inf
    %v1783 = vsel %vm1773, %v1766, -inf
    %v1784 = vmax.f32 %v1782, %v1783
    %v1785 = vrot.slane %v1784, 4
    %v1786 = vmax.f32 %v1784, %v1785
    %v1787 = vrot.slane %v1786, 2
    %v1788 = vmax.f32 %v1786, %v1787
    %v1789 = vrot.slane %v1788, 1
    %v1790 = vmax.f32 %v1788, %v1789
    %v1791 = vld [vmem:[%s4 + $0x20] sm:$0xff]
    %v1792 = vld [vmem:[%s4 + $0x28] sm:$0xff]
    %v1795 = vsel %vm1472, %v1790, %v1781
    %v1796 = vsel %vm591, %v1795, 0
    %1798 = vmatprep.subr.mxu0 0.0
    %1799 = vmatpush1.msra.mxu0 0.0
    %1800 = vmatprep.subr.mxu0 0.0
    %1801 = vmatpush1.msra.mxu0 0.0
    %1802 = vmatprep.subr.mxu0 0.0
    %1803 = vmatpush1.msra.mxu0 0.0
    %1804 = vmatprep.subr.mxu0 0.0
    %1805 = vmatpush1.msra.mxu0 0.0
    %1806 = vmatprep.subr.mxu0 0.0
    %1807 = vmatpush1.msra.mxu0 0.0
    %1808 = vmatprep.subr.mxu0 0.0
    %1809 = vmatpush1.msra.mxu0 0.0
    %1810 = vmatprep.subr.mxu0 0.0
    %1811 = vmatpush1.msra.mxu0 0.0
    %1812 = vmatprep.subr.mxu0 0.0
    %1813 = vmatpush1.msra.mxu0 0.0
    %1814 = vmatprep.subr.mxu0 0.0
    %1815 = vmatpush1.msra.mxu0 0.0
    %1816 = vmatprep.subr.mxu0 0.0
    %1817 = vmatpush1.msra.mxu0 0.0
    %1818 = vmatprep.subr.mxu0 0.0
    %1819 = vmatpush1.msra.mxu0 0.0
    %1820 = vmatprep.subr.mxu0 0.0
    %1821 = vmatpush1.msra.mxu0 0.0
    %1822 = vmatprep.subr.mxu0 0.0
    %1823 = vmatpush1.msra.mxu0 0.0
    %1824 = vmatprep.subr.mxu0 0.0
    %1825 = vmatpush1.msra.mxu0 0.0
    %1826 = vmatprep.subr.mxu0 0.0
    %1827 = vmatpush1.msra.mxu0 %v1792
    %1828 = vmatprep.subr.mxu0 0.0
    %1829 = vmatpush1.msra.mxu0 %v1791
    %1830 = vmatprep.subr.mxu0 0.0
    %1831 = vmatpush2.msra.mxu0 0.0
    %1832 = vmatprep.subr.mxu0 0.0
    %1833 = vmatpush2.msra.mxu0 0.0
    %1834 = vmatprep.subr.mxu0 0.0
    %1835 = vmatpush2.msra.mxu0 0.0
    %1836 = vmatprep.subr.mxu0 0.0
    %1837 = vmatpush2.msra.mxu0 0.0
    %1838 = vmatprep.subr.mxu0 0.0
    %1839 = vmatpush2.msra.mxu0 0.0
    %1840 = vmatprep.subr.mxu0 0.0
    %1841 = vmatpush2.msra.mxu0 0.0
    %1842 = vmatprep.subr.mxu0 0.0
    %1843 = vmatpush2.msra.mxu0 0.0
    %1844 = vmatprep.subr.mxu0 0.0
    %1845 = vmatpush2.msra.mxu0 0.0
    %1846 = vmatprep.subr.mxu0 0.0
    %1847 = vmatpush2.msra.mxu0 0.0
    %1848 = vmatprep.subr.mxu0 0.0
    %1849 = vmatpush2.msra.mxu0 0.0
    %1850 = vmatprep.subr.mxu0 0.0
    %1851 = vmatpush2.msra.mxu0 0.0
    %1852 = vmatprep.subr.mxu0 0.0
    %1853 = vmatpush2.msra.mxu0 0.0
    %1854 = vmatprep.subr.mxu0 0.0
    %1855 = vmatpush2.msra.mxu0 0.0
    %1856 = vmatprep.subr.mxu0 0.0
    %1857 = vmatpush2.msra.mxu0 0.0
    %1858 = vmatprep.subr.mxu0 0.0
    %1859 = vmatpush2.msra.mxu0 0.0
    %1860 = vmatprep.subr.mxu0 0.0
    %1861 = vmatpush2.msra.mxu0 0.0
    %1862 = vmatprep.mubr.f32.mxu0 0.0
    %1863 = vmatmul.mubr.f32.gmra.mxu0 %v1796
    %v1864 = vpop.f32.mrf.mxu0
    %v1865 = vadd.f32 0.0, %v1864
    %v1866 = vpop.f32.mrf.mxu0
    %1867 = vdwg.mxu0
    %v1868 = vadd.f32 %v1618, %v1865
    %v1869 = vld [vmem:[%s3] sm:$0x1]
    %v1871 = vlaneseq
    %v1872 = vshrl.u32 %v1871, 7
    %v1873 = vsub.s32 0, %v1872
    %v1874 = vrot.slane %v1869, %v1873
    %1875 = vrot.lane.b32.xlu0 %v1874, 80
    %v1876 = vpop.permute.xlu0 %1875
    %v1878 = vadd.f32 %v1868, %v1876
    %vm1879 = vcmask 33792
    %1880 = vst.msk [vmem:[#allocation2] sm:$0x3] %vm1879, %v1878
    // Predicated region
    $region22: #{tpu_custom_call.1} parent=1 // pred_check
      _
    $region23: #{tpu_custom_call.1} parent=1 // pred_check_branch
      %1882 = sbr.rel (0) target = $region25
    $region24: #{tpu_custom_call.1} parent=1 // pred_region
      %s1884 = ssub.s32 32, 32
      %1885 = vsyncadd [#allocation3], %s1884
      %s1887 = sshll.u32 [#allocation2], 4
      %s1888 = int_to_ptr.vmem [resolvable:$true] %s1887
      %1890 = dma.vmem_to_hbm [thread:$0]  %s1888, 32, %s5, [#allocation3]
    $region25: #{tpu_custom_call.1} parent=1 // pred_fallthru
      _
    // Predicated region
    $region26: #{tpu_custom_call.1} parent=1 // pred_check
      _
    $region27: #{tpu_custom_call.1} parent=1 // pred_check_branch
      %1892 = sbr.rel (0) target = $region29
    $region28: #{tpu_custom_call.1} parent=1 // pred_region
      %1893 = dma.done [#allocation3], 32
    $region29: #{tpu_custom_call.1} parent=1 // pred_fallthru
      _
    %1894 = vsyncpa [#allocation3], 1

</llo_original>
